<compile_context>
chip_gen: v7x
topology: tpu7x:2x2x1
jax: 0.10.0
libtpu: 0.0.40
codegen_flags: <defaults>
</compile_context>

<pallas_src>
import functools

import jax
import jax.numpy as jnp
from jax import lax
from jax.experimental import pallas as pl
from jax.experimental.pallas import tpu as pltpu

# ----------------------------- scaled-down config -----------------------------
BATCH = 2
IN_CH = 4          # num_input_channels (real: 202)
IMG = 16           # img_size            (real: 128)
PATCH = 4          # patch_size=4 as in ModifiedViT
EMBED = 32         # embed_dim           (real: 384)
DEPTH = 2          # transformer blocks  (real: 12)
HEADS = 4          # attention heads     (real: 6)
HEAD_DIM = EMBED // HEADS
MLP_HIDDEN = 4 * EMBED
NUM_CLASSES = 10   # (real: 1000)
N_PATCH = (IMG // PATCH) ** 2
N_TOK = N_PATCH + 1
CPP = IN_CH * PATCH * PATCH
LN_EPS = 1e-6      # timm ViT uses LayerNorm(eps=1e-6)

VMEM_LIMIT_BYTES = 48 * 1024 * 1024   # fits v7x (64 MiB phys), raises v5e/v6e scoped defaults
TQ_TARGET = 256                        # query/MLP row-tile target (v6e could use 512)


def _pick_tile(n, target):
    """Largest divisor of n that is <= target (keeps the in-kernel tile loop exact)."""
    t = min(n, target)
    while n % t:
        t -= 1
    return t


# ----------------------------- in-kernel helpers (f32 math) -------------------
def _ln(x, g, b, eps):
    mu = jnp.mean(x, axis=-1, keepdims=True)
    var = jnp.mean(jnp.square(x - mu), axis=-1, keepdims=True)
    return (x - mu) * lax.rsqrt(var + eps) * g + b


def _gelu_tanh(x):
    # tanh-approximation GELU: the tanh lands on the EUP slot (free under the fc1/fc2 matmuls).
    # Deviates from torch.nn.GELU() (exact erf) by ~1e-3.
    c = 0.7978845608028654  # sqrt(2/pi)
    return 0.5 * x * (1.0 + jnp.tanh(c * (x + 0.044715 * x * x * x)))


# ----------------------------- fused patch-embed (+cls row) kernel ------------
def _patch_embed_kernel(x_ref, w_ref, b_ref, pos_ref, cls_ref, o_ref):
    # x_ref: (1, N_PATCH, C*P*P) bf16 ; w_ref: (C*P*P, D) bf16
    n = x_ref.shape[1]
    y = jnp.dot(x_ref[0], w_ref[...], preferred_element_type=jnp.float32)
    y = y + b_ref[...] + pos_ref[...]                       # bias + pos_embed (patch rows)
    # Row 0: (cls_token + pos_embed[0]) folded at init; rows 1..N: patch embeddings.
    o_ref[0, pl.ds(0, 1), :] = cls_ref[...].astype(o_ref.dtype)
    o_ref[0, pl.ds(1, n), :] = y.astype(o_ref.dtype)


def patch_embed(xp, w, b, pos, cls_pos):
    B, N, K = xp.shape
    D = w.shape[1]
    # TODO(synk): at the real config (N=1024, K=3232) tile the patch-row axis (128-256 rows).
    return pl.pallas_call(
        _patch_embed_kernel,
        out_shape=jax.ShapeDtypeStruct((B, N + 1, D), jnp.float32),
        grid=(B,),
        in_specs=[
            pl.BlockSpec((1, N, K), lambda i: (i, 0, 0)),
            pl.BlockSpec((K, D), lambda i: (0, 0)),       # resident weight
            pl.BlockSpec((1, D), lambda i: (0, 0)),
            pl.BlockSpec((N, D), lambda i: (0, 0)),       # pos_embed (patch rows)
            pl.BlockSpec((1, D), lambda i: (0, 0)),       # cls_token + pos_embed[0]
        ],
        out_specs=pl.BlockSpec((1, N + 1, D), lambda i: (i, 0, 0)),
        compiler_params=pltpu.CompilerParams(
            dimension_semantics=("parallel",),
            vmem_limit_bytes=VMEM_LIMIT_BYTES),
    )(xp, w, b, pos, cls_pos)


# ----------------------------- fused transformer-block kernel -----------------
def _block_kernel(x_ref, ln1_g, ln1_b, qkv_w, qkv_b, proj_w, proj_b,
                  ln2_g, ln2_b, fc1_w, fc1_b, fc2_w, fc2_b,
                  o_ref,
                  qkv_scr, att_scr, x2_scr,
                  *, heads, eps, tq):
    x = x_ref[0]                                   # (T, D) f32 residual, resident in VMEM
    T, D = x.shape
    hd = D // heads
    n_qt = T // tq                                 # tq divides T by construction

    # ---- LN1 -> fused QKV (1/sqrt(hd) already folded into the Q columns of qkv_w/qkv_b) ----
    h1 = _ln(x, ln1_g[...], ln1_b[...], eps)
    qkv_scr[...] = (jnp.dot(h1.astype(jnp.bfloat16), qkv_w[...],
                            preferred_element_type=jnp.float32)
                    + qkv_b[...]).astype(qkv_scr.dtype)          # (T, 3D) bf16 scratch

    # ---- attention: query tiles vs full resident K/V; per-head writes into scratch ----
    def _attn_tile(qt, carry):
        r0 = qt * tq
        for hh in range(heads):                                   # small static head loop
            q = qkv_scr[pl.ds(r0, tq), pl.ds(hh * hd, hd)]        # (tq, hd) bf16, pre-scaled
            k = qkv_scr[:, pl.ds(D + hh * hd, hd)]                # (T, hd)  bf16
            v = qkv_scr[:, pl.ds(2 * D + hh * hd, hd)]            # (T, hd)  bf16
            # contract last dims directly -> no explicit K transpose
            s = lax.dot_general(q, k, (((1,), (1,)), ((), ())),
                                preferred_element_type=jnp.float32)   # (tq, T) f32
            s = s - jnp.max(s, axis=-1, keepdims=True)
            p = jnp.exp(s)
            p = p * pl.reciprocal(jnp.sum(p, axis=-1, keepdims=True), approx=True)
            att_scr[pl.ds(r0, tq), pl.ds(hh * hd, hd)] = jnp.dot(
                p.astype(jnp.bfloat16), v, preferred_element_type=jnp.float32)
        return carry

    lax.fori_loop(0, n_qt, _attn_tile, 0)

    # ---- attention projection + residual (full (T, D) is small; scratch input is lane-dense) --
    x2_scr[...] = x + jnp.dot(att_scr[...].astype(jnp.bfloat16), proj_w[...],
                              preferred_element_type=jnp.float32) + proj_b[...]

    # ---- MLP over the same row tiles (bounds the (tq, 4D) hidden) ----
    def _mlp_tile(qt, carry):
        r0 = qt * tq
        rows = x2_scr[pl.ds(r0, tq), :]                           # (tq, D) f32
        h = _ln(rows, ln2_g[...], ln2_b[...], eps)
        h = jnp.dot(h.astype(jnp.bfloat16), fc1_w[...],
                    preferred_element_type=jnp.float32) + fc1_b[...]
        h = _gelu_tanh(h)
        out = rows + jnp.dot(h.astype(jnp.bfloat16), fc2_w[...],
                             preferred_element_type=jnp.float32) + fc2_b[...]
        o_ref[0, pl.ds(r0, tq), :] = out.astype(o_ref.dtype)
        return carry

    lax.fori_loop(0, n_qt, _mlp_tile, 0)


def transformer_block(x, blk):
    B, T, D = x.shape
    tq = _pick_tile(T, TQ_TARGET)

    def wspec(shape):
        nd = len(shape)
        return pl.BlockSpec(shape, lambda i, _nd=nd: (0,) * _nd)
    # TODO(synk): on v7x give the constant-index weight specs pipeline_mode=pl.Buffered(1)
    #             to drop the redundant weight double-buffer (~3.6 MB/block at the real config).

    return pl.pallas_call(
        functools.partial(_block_kernel, heads=HEADS, eps=LN_EPS, tq=tq),
        out_shape=jax.ShapeDtypeStruct((B, T, D), jnp.float32),
        grid=(B,),
        in_specs=[
            pl.BlockSpec((1, T, D), lambda i: (i, 0, 0)),
            wspec((1, D)), wspec((1, D)),
            wspec((D, 3 * D)), wspec((1, 3 * D)),
            wspec((D, D)), wspec((1, D)),
            wspec((1, D)), wspec((1, D)),
            wspec((D, MLP_HIDDEN)), wspec((1, MLP_HIDDEN)),
            wspec((MLP_HIDDEN, D)), wspec((1, D)),
        ],
        out_specs=pl.BlockSpec((1, T, D), lambda i: (i, 0, 0)),
        scratch_shapes=[
            pltpu.VMEM((T, 3 * D), jnp.bfloat16),   # qkv (Q pre-scaled), bf16 MXU operand
            pltpu.VMEM((T, D), jnp.float32),        # per-head attention outputs (lane-dense)
            pltpu.VMEM((T, D), jnp.float32),        # post-attention residual
        ],
        compiler_params=pltpu.CompilerParams(
            dimension_semantics=("parallel",),
            vmem_limit_bytes=VMEM_LIMIT_BYTES),
    )(x, blk["ln1_g"], blk["ln1_b"], blk["qkv_w"], blk["qkv_b"],
      blk["proj_w"], blk["proj_b"], blk["ln2_g"], blk["ln2_b"],
      blk["fc1_w"], blk["fc1_b"], blk["fc2_w"], blk["fc2_b"])


# ----------------------------- fused final-LN + head kernel -------------------
def _head_kernel(x_ref, g_ref, b_ref, w_ref, hb_ref, o_ref, *, eps):
    h = _ln(x_ref[...].astype(jnp.float32), g_ref[...], b_ref[...], eps)
    logits = jnp.dot(h.astype(jnp.bfloat16), w_ref[...],
                     preferred_element_type=jnp.float32) + hb_ref[...]
    o_ref[...] = logits.astype(o_ref.dtype)


def cls_head(cls_rows, g, b, w, hb):
    B, D = cls_rows.shape
    C = w.shape[1]

    def fs(shape):
        nd = len(shape)
        return pl.BlockSpec(shape, lambda i, _nd=nd: (0,) * _nd)

    return pl.pallas_call(
        functools.partial(_head_kernel, eps=LN_EPS),
        out_shape=jax.ShapeDtypeStruct((B, C), jnp.float32),
        grid=(1,),
        in_specs=[fs((B, D)), fs((1, D)), fs((1, D)), fs((D, C)), fs((1, C))],
        out_specs=fs((B, C)),
    )(cls_rows, g, b, w, hb)


# ----------------------------- parameters -------------------------------------
def init_params(key):
    kit = iter(jax.random.split(key, 64))

    def nrm(shape, std):
        return std * jax.random.normal(next(kit), shape, dtype=jnp.float32)

    params = {}
    # Conv2d(in=IN_CH, out=EMBED, k=PATCH, stride=PATCH), kaiming_normal fan_out, bias=0.
    fan_out = EMBED * PATCH * PATCH
    patch_w = nrm((EMBED, IN_CH, PATCH, PATCH), (2.0 / fan_out) ** 0.5)
    # Hoisted layout transform: conv weight -> (C*P*P, EMBED) matmul layout, bf16 for the MXU.
    params["patch_w"] = patch_w.reshape(EMBED, CPP).T.astype(jnp.bfloat16)
    params["patch_b"] = jnp.zeros((1, EMBED), jnp.float32)

    cls_token = nrm((1, 1, EMBED), 0.02)
    pos_embed = nrm((1, N_TOK, EMBED), 0.02)          # nn.init.normal_(std=0.02)
    # Hoisted: cls_token + pos_embed[0] folded once, patch rows pre-split.
    params["cls_pos"] = cls_token[0] + pos_embed[:, 0, :]      # (1, EMBED)
    params["pos_patch"] = pos_embed[0, 1:, :]                  # (N_PATCH, EMBED)

    # 1/sqrt(head_dim) folded into the Q columns of the QKV weight/bias (exact, zero-cost hoist).
    scale = float(HEAD_DIM) ** -0.5
    q_col_scale = jnp.concatenate(
        [jnp.full((1, EMBED), scale, jnp.float32),
         jnp.ones((1, 2 * EMBED), jnp.float32)], axis=1)

    blocks = []
    for _ in range(DEPTH):
        qkv_w = nrm((EMBED, 3 * EMBED), 0.02) * q_col_scale
        qkv_b = jnp.zeros((1, 3 * EMBED), jnp.float32) * q_col_scale
        blocks.append(dict(
            ln1_g=jnp.ones((1, EMBED), jnp.float32), ln1_b=jnp.zeros((1, EMBED), jnp.float32),
            qkv_w=qkv_w.astype(jnp.bfloat16),
            qkv_b=qkv_b,
            proj_w=nrm((EMBED, EMBED), 0.02).astype(jnp.bfloat16),
            proj_b=jnp.zeros((1, EMBED), jnp.float32),
            ln2_g=jnp.ones((1, EMBED), jnp.float32), ln2_b=jnp.zeros((1, EMBED), jnp.float32),
            fc1_w=nrm((EMBED, MLP_HIDDEN), 0.02).astype(jnp.bfloat16),
            fc1_b=jnp.zeros((1, MLP_HIDDEN), jnp.float32),
            fc2_w=nrm((MLP_HIDDEN, EMBED), 0.02).astype(jnp.bfloat16),
            fc2_b=jnp.zeros((1, EMBED), jnp.float32),
        ))
    params["blocks"] = blocks
    params["ln_f_g"] = jnp.ones((1, EMBED), jnp.float32)
    params["ln_f_b"] = jnp.zeros((1, EMBED), jnp.float32)
    params["head_w"] = nrm((EMBED, NUM_CLASSES), 0.02).astype(jnp.bfloat16)
    params["head_b"] = jnp.zeros((1, NUM_CLASSES), jnp.float32)
    return params


# ----------------------------- forward pass ------------------------------------
def modified_vit_forward(x, params):
    # x: NCHW (B, C, H, W), same as PyTorch Conv2d input.
    B, C, H, W = x.shape
    nh, nw = H // PATCH, W // PATCH
    n = nh * nw

    # Patchify: Conv2d(kernel=stride=PATCH) == per-patch linear; vector order (C, ph, pw)
    # matches the flattened conv weight.  Pure layout glue; the bf16 cast fuses into the
    # XLA transpose and halves the patch-embed kernel's HBM read.
    xp = x.reshape(B, C, nh, PATCH, nw, PATCH)
    xp = xp.transpose(0, 2, 4, 1, 3, 5).reshape(B, n, C * PATCH * PATCH)
    xp = xp.astype(jnp.bfloat16)

    # Fused: patch-embed matmul + bias + pos_embed + cls row -> full (B, T, D) residual stream.
    xf = patch_embed(xp, params["patch_w"], params["patch_b"],
                     params["pos_patch"], params["cls_pos"])

    # One fused Pallas kernel per transformer block (activations resident in VMEM).
    for blk in params["blocks"]:
        xf = transformer_block(xf, blk)

    # 'token' pooling: LayerNorm is row-wise, so LN(x)[:, 0] == LN(x[:, 0]).
    cls_rows = xf[:, 0, :]
    logits = cls_head(cls_rows, params["ln_f_g"], params["ln_f_b"],
                      params["head_w"], params["head_b"])        # (B, NUM_CLASSES)
    return logits


# TODO(synk): timm's dropout / drop-path layers are identity at the default rates (0.0),
# so they are intentionally omitted rather than faked.

if __name__ == "__main__":
    key = jax.random.PRNGKey(0)
    pkey, xkey = jax.random.split(key)
    params = init_params(pkey)
    x = jax.random.normal(xkey, (BATCH, IN_CH, IMG, IMG), dtype=jnp.float32)

    fwd = jax.jit(modified_vit_forward)
    logits = fwd(x, params)
    jax.block_until_ready(logits)
    assert logits.shape == (BATCH, NUM_CLASSES), logits.shape
    assert bool(jnp.all(jnp.isfinite(logits)))
    print("KERNEL_OK")
</pallas_src>

<mosaic_0001>
module attributes {stable_mosaic.version = 11 : i64} {
  func.func @_patch_embed_kernel(%arg0: i32, %arg1: memref<1x16x64xbf16, #tpu.memory_space<vmem>>, %arg2: memref<64x32xbf16, #tpu.memory_space<vmem>>, %arg3: memref<1x32xf32, #tpu.memory_space<vmem>>, %arg4: memref<16x32xf32, #tpu.memory_space<vmem>>, %arg5: memref<1x32xf32, #tpu.memory_space<vmem>>, %arg6: memref<1x17x32xf32, #tpu.memory_space<vmem>>) attributes {dimension_semantics = [#tpu.dimension_semantics<parallel>], iteration_bounds = array<i64: 2>, scalar_prefetch = 0 : i64, scratch_operands = 0 : i64, tpu.core_type = #tpu.core_type<tc>, window_params = [{transform_indices = @transform_0, window_bounds = array<i64: 1, 16, 64>}, {pipeline_mode = #tpu.pipeline_mode<synchronous>, transform_indices = @transform_1, window_bounds = array<i64: 64, 32>}, {pipeline_mode = #tpu.pipeline_mode<synchronous>, transform_indices = @transform_2, window_bounds = array<i64: 1, 32>}, {pipeline_mode = #tpu.pipeline_mode<synchronous>, transform_indices = @transform_3, window_bounds = array<i64: 16, 32>}, {pipeline_mode = #tpu.pipeline_mode<synchronous>, transform_indices = @transform_4, window_bounds = array<i64: 1, 32>}, {transform_indices = @transform_5, window_bounds = array<i64: 1, 17, 32>}]} {
    %c0 = arith.constant 0 : index
    %c0_0 = arith.constant 0 : index
    %c0_1 = arith.constant 0 : index
    %0 = vector.load %arg1[%c0, %c0_0, %c0_1] : memref<1x16x64xbf16, #tpu.memory_space<vmem>>, vector<1x16x64xbf16>
    %1 = vector.shape_cast %0 : vector<1x16x64xbf16> to vector<16x64xbf16>
    %c0_2 = arith.constant 0 : index
    %c0_3 = arith.constant 0 : index
    %2 = vector.load %arg2[%c0_2, %c0_3] : memref<64x32xbf16, #tpu.memory_space<vmem>>, vector<64x32xbf16>
    %cst = arith.constant dense<0.000000e+00> : vector<16x32xf32>
    %3 = tpu.matmul %1, %2, %cst {dimension_numbers = #tpu.dot_dimension_numbers<[1], [0], [0], [1], [0, 0, 1, 1], [], []>} : vector<16x64xbf16>, vector<64x32xbf16>, vector<16x32xf32> -> vector<16x32xf32>
    %c0_4 = arith.constant 0 : index
    %c0_5 = arith.constant 0 : index
    %4 = vector.load %arg3[%c0_4, %c0_5] : memref<1x32xf32, #tpu.memory_space<vmem>>, vector<1x32xf32>
    %5 = vector.broadcast %4 : vector<1x32xf32> to vector<16x32xf32>
    %6 = arith.addf %3, %5 : vector<16x32xf32>
    %c0_6 = arith.constant 0 : index
    %c0_7 = arith.constant 0 : index
    %7 = vector.load %arg4[%c0_6, %c0_7] : memref<16x32xf32, #tpu.memory_space<vmem>>, vector<16x32xf32>
    %8 = arith.addf %6, %7 : vector<16x32xf32>
    %c0_8 = arith.constant 0 : index
    %c0_9 = arith.constant 0 : index
    %9 = vector.load %arg5[%c0_8, %c0_9] : memref<1x32xf32, #tpu.memory_space<vmem>>, vector<1x32xf32>
    %c0_10 = arith.constant 0 : index
    %c0_11 = arith.constant 0 : index
    %c0_12 = arith.constant 0 : index
    %10 = vector.load %arg6[%c0_10, %c0_11, %c0_12] : memref<1x17x32xf32, #tpu.memory_space<vmem>>, vector<1x1x32xf32>
    %11 = vector.shape_cast %10 : vector<1x1x32xf32> to vector<1x32xf32>
    %12 = vector.shape_cast %9 : vector<1x32xf32> to vector<1x1x32xf32>
    tpu.vector_store %arg6[%c0_10, %c0_11, %c0_12], %12 {strides = array<i32>} : memref<1x17x32xf32, #tpu.memory_space<vmem>>, vector<1x1x32xf32>,
    %c0_13 = arith.constant 0 : index
    %c1 = arith.constant 1 : index
    %c0_14 = arith.constant 0 : index
    %13 = vector.load %arg6[%c0_13, %c1, %c0_14] : memref<1x17x32xf32, #tpu.memory_space<vmem>>, vector<1x16x32xf32>
    %14 = vector.shape_cast %13 : vector<1x16x32xf32> to vector<16x32xf32>
    %15 = vector.shape_cast %8 : vector<16x32xf32> to vector<1x16x32xf32>
    tpu.vector_store %arg6[%c0_13, %c1, %c0_14], %15 {strides = array<i32>} : memref<1x17x32xf32, #tpu.memory_space<vmem>>, vector<1x16x32xf32>,
    return
  }
  func.func @transform_0(%arg0: i32) -> (i32, i32, i32) {
    %c0_i32 = arith.constant 0 : i32
    %c0_i32_0 = arith.constant 0 : i32
    %c0_i32_1 = arith.constant 0 : i32
    return %arg0, %c0_i32, %c0_i32_0 : i32, i32, i32
  }
  func.func @transform_1(%arg0: i32) -> (i32, i32) {
    %c0_i32 = arith.constant 0 : i32
    %c0_i32_0 = arith.constant 0 : i32
    %c0_i32_1 = arith.constant 0 : i32
    return %c0_i32, %c0_i32_0 : i32, i32
  }
  func.func @transform_2(%arg0: i32) -> (i32, i32) {
    %c0_i32 = arith.constant 0 : i32
    %c0_i32_0 = arith.constant 0 : i32
    %c0_i32_1 = arith.constant 0 : i32
    return %c0_i32, %c0_i32_0 : i32, i32
  }
  func.func @transform_3(%arg0: i32) -> (i32, i32) {
    %c0_i32 = arith.constant 0 : i32
    %c0_i32_0 = arith.constant 0 : i32
    %c0_i32_1 = arith.constant 0 : i32
    return %c0_i32, %c0_i32_0 : i32, i32
  }
  func.func @transform_4(%arg0: i32) -> (i32, i32) {
    %c0_i32 = arith.constant 0 : i32
    %c0_i32_0 = arith.constant 0 : i32
    %c0_i32_1 = arith.constant 0 : i32
    return %c0_i32, %c0_i32_0 : i32, i32
  }
  func.func @transform_5(%arg0: i32) -> (i32, i32, i32) {
    %c0_i32 = arith.constant 0 : i32
    %c0_i32_0 = arith.constant 0 : i32
    %c0_i32_1 = arith.constant 0 : i32
    return %arg0, %c0_i32, %c0_i32_0 : i32, i32, i32
  }
}

module attributes {stable_mosaic.version = 11 : i64} {
  func.func @_block_kernel(%arg0: i32, %arg1: memref<1x17x32xf32, #tpu.memory_space<vmem>>, %arg2: memref<1x32xf32, #tpu.memory_space<vmem>>, %arg3: memref<1x32xf32, #tpu.memory_space<vmem>>, %arg4: memref<32x96xbf16, #tpu.memory_space<vmem>>, %arg5: memref<1x96xf32, #tpu.memory_space<vmem>>, %arg6: memref<32x32xbf16, #tpu.memory_space<vmem>>, %arg7: memref<1x32xf32, #tpu.memory_space<vmem>>, %arg8: memref<1x32xf32, #tpu.memory_space<vmem>>, %arg9: memref<1x32xf32, #tpu.memory_space<vmem>>, %arg10: memref<32x128xbf16, #tpu.memory_space<vmem>>, %arg11: memref<1x128xf32, #tpu.memory_space<vmem>>, %arg12: memref<128x32xbf16, #tpu.memory_space<vmem>>, %arg13: memref<1x32xf32, #tpu.memory_space<vmem>>, %arg14: memref<1x17x32xf32, #tpu.memory_space<vmem>>, %arg15: memref<17x96xbf16, #tpu.memory_space<vmem>>, %arg16: memref<17x32xf32, #tpu.memory_space<vmem>>, %arg17: memref<17x32xf32, #tpu.memory_space<vmem>>) attributes {dimension_semantics = [#tpu.dimension_semantics<parallel>], iteration_bounds = array<i64: 2>, scalar_prefetch = 0 : i64, scratch_operands = 3 : i64, tpu.core_type = #tpu.core_type<tc>, window_params = [{transform_indices = @transform_0, window_bounds = array<i64: 1, 17, 32>}, {pipeline_mode = #tpu.pipeline_mode<synchronous>, transform_indices = @transform_1, window_bounds = array<i64: 1, 32>}, {pipeline_mode = #tpu.pipeline_mode<synchronous>, transform_indices = @transform_2, window_bounds = array<i64: 1, 32>}, {pipeline_mode = #tpu.pipeline_mode<synchronous>, transform_indices = @transform_3, window_bounds = array<i64: 32, 96>}, {pipeline_mode = #tpu.pipeline_mode<synchronous>, transform_indices = @transform_4, window_bounds = array<i64: 1, 96>}, {pipeline_mode = #tpu.pipeline_mode<synchronous>, transform_indices = @transform_5, window_bounds = array<i64: 32, 32>}, {pipeline_mode = #tpu.pipeline_mode<synchronous>, transform_indices = @transform_6, window_bounds = array<i64: 1, 32>}, {pipeline_mode = #tpu.pipeline_mode<synchronous>, transform_indices = @transform_7, window_bounds = array<i64: 1, 32>}, {pipeline_mode = #tpu.pipeline_mode<synchronous>, transform_indices = @transform_8, window_bounds = array<i64: 1, 32>}, {pipeline_mode = #tpu.pipeline_mode<synchronous>, transform_indices = @transform_9, window_bounds = array<i64: 32, 128>}, {pipeline_mode = #tpu.pipeline_mode<synchronous>, transform_indices = @transform_10, window_bounds = array<i64: 1, 128>}, {pipeline_mode = #tpu.pipeline_mode<synchronous>, transform_indices = @transform_11, window_bounds = array<i64: 128, 32>}, {pipeline_mode = #tpu.pipeline_mode<synchronous>, transform_indices = @transform_12, window_bounds = array<i64: 1, 32>}, {transform_indices = @transform_13, window_bounds = array<i64: 1, 17, 32>}]} {
    %c0 = arith.constant 0 : index
    %c0_0 = arith.constant 0 : index
    %c0_1 = arith.constant 0 : index
    %0 = vector.load %arg1[%c0, %c0_0, %c0_1] : memref<1x17x32xf32, #tpu.memory_space<vmem>>, vector<1x17x32xf32>
    %1 = vector.shape_cast %0 : vector<1x17x32xf32> to vector<17x32xf32>
    %c0_2 = arith.constant 0 : index
    %c0_3 = arith.constant 0 : index
    %2 = vector.load %arg2[%c0_2, %c0_3] : memref<1x32xf32, #tpu.memory_space<vmem>>, vector<1x32xf32>
    %c0_4 = arith.constant 0 : index
    %c0_5 = arith.constant 0 : index
    %3 = vector.load %arg3[%c0_4, %c0_5] : memref<1x32xf32, #tpu.memory_space<vmem>>, vector<1x32xf32>
    %cst = arith.constant dense<0.000000e+00> : vector<17xf32>
    %4 = vector.multi_reduction <add>, %1, %cst [1] : vector<17x32xf32> to vector<17xf32>
    %5 = vector.shape_cast %4 : vector<17xf32> to vector<17x1xf32>
    %cst_6 = arith.constant 3.200000e+01 : f32
    %6 = vector.broadcast %cst_6 : f32 to vector<17x1xf32>
    %7 = arith.divf %5, %6 : vector<17x1xf32>
    %8 = vector.broadcast %7 : vector<17x1xf32> to vector<17x32xf32>
    %9 = arith.subf %1, %8 : vector<17x32xf32>
    %10 = arith.mulf %9, %9 : vector<17x32xf32>
    %cst_7 = arith.constant dense<0.000000e+00> : vector<17xf32>
    %11 = vector.multi_reduction <add>, %10, %cst_7 [1] : vector<17x32xf32> to vector<17xf32>
    %12 = vector.shape_cast %11 : vector<17xf32> to vector<17x1xf32>
    %cst_8 = arith.constant 3.200000e+01 : f32
    %13 = vector.broadcast %cst_8 : f32 to vector<17x1xf32>
    %14 = arith.divf %12, %13 : vector<17x1xf32>
    %15 = vector.broadcast %7 : vector<17x1xf32> to vector<17x32xf32>
    %16 = arith.subf %1, %15 : vector<17x32xf32>
    %cst_9 = arith.constant 9.99999997E-7 : f32
    %17 = vector.broadcast %cst_9 : f32 to vector<17x1xf32>
    %18 = arith.addf %14, %17 : vector<17x1xf32>
    %19 = math.rsqrt %18 : vector<17x1xf32>
    %20 = vector.broadcast %19 : vector<17x1xf32> to vector<17x32xf32>
    %21 = arith.mulf %16, %20 : vector<17x32xf32>
    %22 = vector.broadcast %2 : vector<1x32xf32> to vector<17x32xf32>
    %23 = arith.mulf %21, %22 : vector<17x32xf32>
    %24 = vector.broadcast %3 : vector<1x32xf32> to vector<17x32xf32>
    %25 = arith.addf %23, %24 : vector<17x32xf32>
    %26 = arith.truncf %25 : vector<17x32xf32> to vector<17x32xbf16>
    %c0_10 = arith.constant 0 : index
    %c0_11 = arith.constant 0 : index
    %27 = vector.load %arg4[%c0_10, %c0_11] : memref<32x96xbf16, #tpu.memory_space<vmem>>, vector<32x96xbf16>
    %cst_12 = arith.constant dense<0.000000e+00> : vector<17x96xf32>
    %28 = tpu.matmul %26, %27, %cst_12 {dimension_numbers = #tpu.dot_dimension_numbers<[1], [0], [0], [1], [0, 0, 1, 1], [], []>} : vector<17x32xbf16>, vector<32x96xbf16>, vector<17x96xf32> -> vector<17x96xf32>
    %c0_13 = arith.constant 0 : index
    %c0_14 = arith.constant 0 : index
    %29 = vector.load %arg5[%c0_13, %c0_14] : memref<1x96xf32, #tpu.memory_space<vmem>>, vector<1x96xf32>
    %30 = vector.broadcast %29 : vector<1x96xf32> to vector<17x96xf32>
    %31 = arith.addf %28, %30 : vector<17x96xf32>
    %32 = arith.truncf %31 : vector<17x96xf32> to vector<17x96xbf16>
    %c0_15 = arith.constant 0 : index
    %c0_16 = arith.constant 0 : index
    %33 = vector.load %arg15[%c0_15, %c0_16] : memref<17x96xbf16, #tpu.memory_space<vmem>>, vector<17x96xbf16>
    tpu.vector_store %arg15[%c0_15, %c0_16], %32 {strides = array<i32>} : memref<17x96xbf16, #tpu.memory_space<vmem>>, vector<17x96xbf16>,
    %c0_i32 = arith.constant 0 : i32
    %c17_i32 = arith.constant 17 : i32
    %34 = arith.muli %c0_i32, %c17_i32 : i32
    %35 = arith.index_cast %34 : i32 to index
    %c0_17 = arith.constant 0 : index
    %36 = vector.load %arg15[%35, %c0_17] : memref<17x96xbf16, #tpu.memory_space<vmem>>, vector<17x8xbf16>
    %c0_18 = arith.constant 0 : index
    %c32 = arith.constant 32 : index
    %37 = vector.load %arg15[%c0_18, %c32] : memref<17x96xbf16, #tpu.memory_space<vmem>>, vector<17x8xbf16>
    %c0_19 = arith.constant 0 : index
    %c64 = arith.constant 64 : index
    %38 = vector.load %arg15[%c0_19, %c64] : memref<17x96xbf16, #tpu.memory_space<vmem>>, vector<17x8xbf16>
    %cst_20 = arith.constant dense<0.000000e+00> : vector<17x17xf32>
    %39 = tpu.matmul %36, %37, %cst_20 {dimension_numbers = #tpu.dot_dimension_numbers<[1], [1], [0], [0], [0, 0, 1, 0], [], []>} : vector<17x8xbf16>, vector<17x8xbf16>, vector<17x17xf32> -> vector<17x17xf32>
    %cst_21 = arith.constant dense<0xFF800000> : vector<17xf32>
    %40 = vector.multi_reduction <maximumf>, %39, %cst_21 [1] : vector<17x17xf32> to vector<17xf32>
    %41 = vector.shape_cast %40 : vector<17xf32> to vector<17x1xf32>
    %42 = vector.broadcast %41 : vector<17x1xf32> to vector<17x17xf32>
    %43 = arith.subf %39, %42 : vector<17x17xf32>
    %44 = math.exp %43 : vector<17x17xf32>
    %cst_22 = arith.constant dense<0.000000e+00> : vector<17xf32>
    %45 = vector.multi_reduction <add>, %44, %cst_22 [1] : vector<17x17xf32> to vector<17xf32>
    %46 = vector.shape_cast %45 : vector<17xf32> to vector<17x1xf32>
    %47 = tpu.reciprocal %46 {approx = true} : vector<17x1xf32> -> vector<17x1xf32>
    %48 = vector.broadcast %47 : vector<17x1xf32> to vector<17x17xf32>
    %49 = arith.mulf %44, %48 : vector<17x17xf32>
    %50 = arith.truncf %49 : vector<17x17xf32> to vector<17x17xbf16>
    %cst_23 = arith.constant dense<0.000000e+00> : vector<17x8xf32>
    %51 = tpu.matmul %50, %38, %cst_23 {dimension_numbers = #tpu.dot_dimension_numbers<[1], [0], [0], [1], [0, 0, 1, 1], [], []>} : vector<17x17xbf16>, vector<17x8xbf16>, vector<17x8xf32> -> vector<17x8xf32>
    %52 = arith.index_cast %34 : i32 to index
    %c0_24 = arith.constant 0 : index
    %53 = vector.load %arg16[%52, %c0_24] : memref<17x32xf32, #tpu.memory_space<vmem>>, vector<17x8xf32>
    tpu.vector_store %arg16[%52, %c0_24], %51 {strides = array<i32>} : memref<17x32xf32, #tpu.memory_space<vmem>>, vector<17x8xf32>,
    %54 = arith.index_cast %34 : i32 to index
    %c8 = arith.constant 8 : index
    %55 = vector.load %arg15[%54, %c8] : memref<17x96xbf16, #tpu.memory_space<vmem>>, vector<17x8xbf16>
    %c0_25 = arith.constant 0 : index
    %c40 = arith.constant 40 : index
    %56 = vector.load %arg15[%c0_25, %c40] : memref<17x96xbf16, #tpu.memory_space<vmem>>, vector<17x8xbf16>
    %c0_26 = arith.constant 0 : index
    %c72 = arith.constant 72 : index
    %57 = vector.load %arg15[%c0_26, %c72] : memref<17x96xbf16, #tpu.memory_space<vmem>>, vector<17x8xbf16>
    %cst_27 = arith.constant dense<0.000000e+00> : vector<17x17xf32>
    %58 = tpu.matmul %55, %56, %cst_27 {dimension_numbers = #tpu.dot_dimension_numbers<[1], [1], [0], [0], [0, 0, 1, 0], [], []>} : vector<17x8xbf16>, vector<17x8xbf16>, vector<17x17xf32> -> vector<17x17xf32>
    %cst_28 = arith.constant dense<0xFF800000> : vector<17xf32>
    %59 = vector.multi_reduction <maximumf>, %58, %cst_28 [1] : vector<17x17xf32> to vector<17xf32>
    %60 = vector.shape_cast %59 : vector<17xf32> to vector<17x1xf32>
    %61 = vector.broadcast %60 : vector<17x1xf32> to vector<17x17xf32>
    %62 = arith.subf %58, %61 : vector<17x17xf32>
    %63 = math.exp %62 : vector<17x17xf32>
    %cst_29 = arith.constant dense<0.000000e+00> : vector<17xf32>
    %64 = vector.multi_reduction <add>, %63, %cst_29 [1] : vector<17x17xf32> to vector<17xf32>
    %65 = vector.shape_cast %64 : vector<17xf32> to vector<17x1xf32>
    %66 = tpu.reciprocal %65 {approx = true} : vector<17x1xf32> -> vector<17x1xf32>
    %67 = vector.broadcast %66 : vector<17x1xf32> to vector<17x17xf32>
    %68 = arith.mulf %63, %67 : vector<17x17xf32>
    %69 = arith.truncf %68 : vector<17x17xf32> to vector<17x17xbf16>
    %cst_30 = arith.constant dense<0.000000e+00> : vector<17x8xf32>
    %70 = tpu.matmul %69, %57, %cst_30 {dimension_numbers = #tpu.dot_dimension_numbers<[1], [0], [0], [1], [0, 0, 1, 1], [], []>} : vector<17x17xbf16>, vector<17x8xbf16>, vector<17x8xf32> -> vector<17x8xf32>
    %71 = arith.index_cast %34 : i32 to index
    %c8_31 = arith.constant 8 : index
    %72 = vector.load %arg16[%71, %c8_31] : memref<17x32xf32, #tpu.memory_space<vmem>>, vector<17x8xf32>
    tpu.vector_store %arg16[%71, %c8_31], %70 {strides = array<i32>} : memref<17x32xf32, #tpu.memory_space<vmem>>, vector<17x8xf32>,
    %73 = arith.index_cast %34 : i32 to index
    %c16 = arith.constant 16 : index
    %74 = vector.load %arg15[%73, %c16] : memref<17x96xbf16, #tpu.memory_space<vmem>>, vector<17x8xbf16>
    %c0_32 = arith.constant 0 : index
    %c48 = arith.constant 48 : index
    %75 = vector.load %arg15[%c0_32, %c48] : memref<17x96xbf16, #tpu.memory_space<vmem>>, vector<17x8xbf16>
    %c0_33 = arith.constant 0 : index
    %c80 = arith.constant 80 : index
    %76 = vector.load %arg15[%c0_33, %c80] : memref<17x96xbf16, #tpu.memory_space<vmem>>, vector<17x8xbf16>
    %cst_34 = arith.constant dense<0.000000e+00> : vector<17x17xf32>
    %77 = tpu.matmul %74, %75, %cst_34 {dimension_numbers = #tpu.dot_dimension_numbers<[1], [1], [0], [0], [0, 0, 1, 0], [], []>} : vector<17x8xbf16>, vector<17x8xbf16>, vector<17x17xf32> -> vector<17x17xf32>
    %cst_35 = arith.constant dense<0xFF800000> : vector<17xf32>
    %78 = vector.multi_reduction <maximumf>, %77, %cst_35 [1] : vector<17x17xf32> to vector<17xf32>
    %79 = vector.shape_cast %78 : vector<17xf32> to vector<17x1xf32>
    %80 = vector.broadcast %79 : vector<17x1xf32> to vector<17x17xf32>
    %81 = arith.subf %77, %80 : vector<17x17xf32>
    %82 = math.exp %81 : vector<17x17xf32>
    %cst_36 = arith.constant dense<0.000000e+00> : vector<17xf32>
    %83 = vector.multi_reduction <add>, %82, %cst_36 [1] : vector<17x17xf32> to vector<17xf32>
    %84 = vector.shape_cast %83 : vector<17xf32> to vector<17x1xf32>
    %85 = tpu.reciprocal %84 {approx = true} : vector<17x1xf32> -> vector<17x1xf32>
    %86 = vector.broadcast %85 : vector<17x1xf32> to vector<17x17xf32>
    %87 = arith.mulf %82, %86 : vector<17x17xf32>
    %88 = arith.truncf %87 : vector<17x17xf32> to vector<17x17xbf16>
    %cst_37 = arith.constant dense<0.000000e+00> : vector<17x8xf32>
    %89 = tpu.matmul %88, %76, %cst_37 {dimension_numbers = #tpu.dot_dimension_numbers<[1], [0], [0], [1], [0, 0, 1, 1], [], []>} : vector<17x17xbf16>, vector<17x8xbf16>, vector<17x8xf32> -> vector<17x8xf32>
    %90 = arith.index_cast %34 : i32 to index
    %c16_38 = arith.constant 16 : index
    %91 = vector.load %arg16[%90, %c16_38] : memref<17x32xf32, #tpu.memory_space<vmem>>, vector<17x8xf32>
    tpu.vector_store %arg16[%90, %c16_38], %89 {strides = array<i32>} : memref<17x32xf32, #tpu.memory_space<vmem>>, vector<17x8xf32>,
    %92 = arith.index_cast %34 : i32 to index
    %c24 = arith.constant 24 : index
    %93 = vector.load %arg15[%92, %c24] : memref<17x96xbf16, #tpu.memory_space<vmem>>, vector<17x8xbf16>
    %c0_39 = arith.constant 0 : index
    %c56 = arith.constant 56 : index
    %94 = vector.load %arg15[%c0_39, %c56] : memref<17x96xbf16, #tpu.memory_space<vmem>>, vector<17x8xbf16>
    %c0_40 = arith.constant 0 : index
    %c88 = arith.constant 88 : index
    %95 = vector.load %arg15[%c0_40, %c88] : memref<17x96xbf16, #tpu.memory_space<vmem>>, vector<17x8xbf16>
    %cst_41 = arith.constant dense<0.000000e+00> : vector<17x17xf32>
    %96 = tpu.matmul %93, %94, %cst_41 {dimension_numbers = #tpu.dot_dimension_numbers<[1], [1], [0], [0], [0, 0, 1, 0], [], []>} : vector<17x8xbf16>, vector<17x8xbf16>, vector<17x17xf32> -> vector<17x17xf32>
    %cst_42 = arith.constant dense<0xFF800000> : vector<17xf32>
    %97 = vector.multi_reduction <maximumf>, %96, %cst_42 [1] : vector<17x17xf32> to vector<17xf32>
    %98 = vector.shape_cast %97 : vector<17xf32> to vector<17x1xf32>
    %99 = vector.broadcast %98 : vector<17x1xf32> to vector<17x17xf32>
    %100 = arith.subf %96, %99 : vector<17x17xf32>
    %101 = math.exp %100 : vector<17x17xf32>
    %cst_43 = arith.constant dense<0.000000e+00> : vector<17xf32>
    %102 = vector.multi_reduction <add>, %101, %cst_43 [1] : vector<17x17xf32> to vector<17xf32>
    %103 = vector.shape_cast %102 : vector<17xf32> to vector<17x1xf32>
    %104 = tpu.reciprocal %103 {approx = true} : vector<17x1xf32> -> vector<17x1xf32>
    %105 = vector.broadcast %104 : vector<17x1xf32> to vector<17x17xf32>
    %106 = arith.mulf %101, %105 : vector<17x17xf32>
    %107 = arith.truncf %106 : vector<17x17xf32> to vector<17x17xbf16>
    %cst_44 = arith.constant dense<0.000000e+00> : vector<17x8xf32>
    %108 = tpu.matmul %107, %95, %cst_44 {dimension_numbers = #tpu.dot_dimension_numbers<[1], [0], [0], [1], [0, 0, 1, 1], [], []>} : vector<17x17xbf16>, vector<17x8xbf16>, vector<17x8xf32> -> vector<17x8xf32>
    %109 = arith.index_cast %34 : i32 to index
    %c24_45 = arith.constant 24 : index
    %110 = vector.load %arg16[%109, %c24_45] : memref<17x32xf32, #tpu.memory_space<vmem>>, vector<17x8xf32>
    tpu.vector_store %arg16[%109, %c24_45], %108 {strides = array<i32>} : memref<17x32xf32, #tpu.memory_space<vmem>>, vector<17x8xf32>,
    %c1_i32 = arith.constant 1 : i32
    %c0_46 = arith.constant 0 : index
    %c0_47 = arith.constant 0 : index
    %111 = vector.load %arg16[%c0_46, %c0_47] : memref<17x32xf32, #tpu.memory_space<vmem>>, vector<17x32xf32>
    %112 = arith.truncf %111 : vector<17x32xf32> to vector<17x32xbf16>
    %c0_48 = arith.constant 0 : index
    %c0_49 = arith.constant 0 : index
    %113 = vector.load %arg6[%c0_48, %c0_49] : memref<32x32xbf16, #tpu.memory_space<vmem>>, vector<32x32xbf16>
    %cst_50 = arith.constant dense<0.000000e+00> : vector<17x32xf32>
    %114 = tpu.matmul %112, %113, %cst_50 {dimension_numbers = #tpu.dot_dimension_numbers<[1], [0], [0], [1], [0, 0, 1, 1], [], []>} : vector<17x32xbf16>, vector<32x32xbf16>, vector<17x32xf32> -> vector<17x32xf32>
    %115 = arith.addf %1, %114 : vector<17x32xf32>
    %c0_51 = arith.constant 0 : index
    %c0_52 = arith.constant 0 : index
    %116 = vector.load %arg7[%c0_51, %c0_52] : memref<1x32xf32, #tpu.memory_space<vmem>>, vector<1x32xf32>
    %117 = vector.broadcast %116 : vector<1x32xf32> to vector<17x32xf32>
    %118 = arith.addf %115, %117 : vector<17x32xf32>
    %c0_53 = arith.constant 0 : index
    %c0_54 = arith.constant 0 : index
    %119 = vector.load %arg17[%c0_53, %c0_54] : memref<17x32xf32, #tpu.memory_space<vmem>>, vector<17x32xf32>
    tpu.vector_store %arg17[%c0_53, %c0_54], %118 {strides = array<i32>} : memref<17x32xf32, #tpu.memory_space<vmem>>, vector<17x32xf32>,
    %c0_i32_55 = arith.constant 0 : i32
    %c17_i32_56 = arith.constant 17 : i32
    %120 = arith.muli %c0_i32_55, %c17_i32_56 : i32
    %121 = arith.index_cast %120 : i32 to index
    %c0_57 = arith.constant 0 : index
    %122 = vector.load %arg17[%121, %c0_57] : memref<17x32xf32, #tpu.memory_space<vmem>>, vector<17x32xf32>
    %c0_58 = arith.constant 0 : index
    %c0_59 = arith.constant 0 : index
    %123 = vector.load %arg8[%c0_58, %c0_59] : memref<1x32xf32, #tpu.memory_space<vmem>>, vector<1x32xf32>
    %c0_60 = arith.constant 0 : index
    %c0_61 = arith.constant 0 : index
    %124 = vector.load %arg9[%c0_60, %c0_61] : memref<1x32xf32, #tpu.memory_space<vmem>>, vector<1x32xf32>
    %cst_62 = arith.constant dense<0.000000e+00> : vector<17xf32>
    %125 = vector.multi_reduction <add>, %122, %cst_62 [1] : vector<17x32xf32> to vector<17xf32>
    %126 = vector.shape_cast %125 : vector<17xf32> to vector<17x1xf32>
    %cst_63 = arith.constant 3.200000e+01 : f32
    %127 = vector.broadcast %cst_63 : f32 to vector<17x1xf32>
    %128 = arith.divf %126, %127 : vector<17x1xf32>
    %129 = vector.broadcast %128 : vector<17x1xf32> to vector<17x32xf32>
    %130 = arith.subf %122, %129 : vector<17x32xf32>
    %131 = arith.mulf %130, %130 : vector<17x32xf32>
    %cst_64 = arith.constant dense<0.000000e+00> : vector<17xf32>
    %132 = vector.multi_reduction <add>, %131, %cst_64 [1] : vector<17x32xf32> to vector<17xf32>
    %133 = vector.shape_cast %132 : vector<17xf32> to vector<17x1xf32>
    %cst_65 = arith.constant 3.200000e+01 : f32
    %134 = vector.broadcast %cst_65 : f32 to vector<17x1xf32>
    %135 = arith.divf %133, %134 : vector<17x1xf32>
    %136 = vector.broadcast %128 : vector<17x1xf32> to vector<17x32xf32>
    %137 = arith.subf %122, %136 : vector<17x32xf32>
    %cst_66 = arith.constant 9.99999997E-7 : f32
    %138 = vector.broadcast %cst_66 : f32 to vector<17x1xf32>
    %139 = arith.addf %135, %138 : vector<17x1xf32>
    %140 = math.rsqrt %139 : vector<17x1xf32>
    %141 = vector.broadcast %140 : vector<17x1xf32> to vector<17x32xf32>
    %142 = arith.mulf %137, %141 : vector<17x32xf32>
    %143 = vector.broadcast %123 : vector<1x32xf32> to vector<17x32xf32>
    %144 = arith.mulf %142, %143 : vector<17x32xf32>
    %145 = vector.broadcast %124 : vector<1x32xf32> to vector<17x32xf32>
    %146 = arith.addf %144, %145 : vector<17x32xf32>
    %147 = arith.truncf %146 : vector<17x32xf32> to vector<17x32xbf16>
    %c0_67 = arith.constant 0 : index
    %c0_68 = arith.constant 0 : index
    %148 = vector.load %arg10[%c0_67, %c0_68] : memref<32x128xbf16, #tpu.memory_space<vmem>>, vector<32x128xbf16>
    %cst_69 = arith.constant dense<0.000000e+00> : vector<17x128xf32>
    %149 = tpu.matmul %147, %148, %cst_69 {dimension_numbers = #tpu.dot_dimension_numbers<[1], [0], [0], [1], [0, 0, 1, 1], [], []>} : vector<17x32xbf16>, vector<32x128xbf16>, vector<17x128xf32> -> vector<17x128xf32>
    %c0_70 = arith.constant 0 : index
    %c0_71 = arith.constant 0 : index
    %150 = vector.load %arg11[%c0_70, %c0_71] : memref<1x128xf32, #tpu.memory_space<vmem>>, vector<1x128xf32>
    %151 = vector.broadcast %150 : vector<1x128xf32> to vector<17x128xf32>
    %152 = arith.addf %149, %151 : vector<17x128xf32>
    %cst_72 = arith.constant 5.000000e-01 : f32
    %153 = vector.broadcast %cst_72 : f32 to vector<17x128xf32>
    %154 = arith.mulf %153, %152 : vector<17x128xf32>
    %cst_73 = arith.constant 4.471500e-02 : f32
    %155 = vector.broadcast %cst_73 : f32 to vector<17x128xf32>
    %156 = arith.mulf %155, %152 : vector<17x128xf32>
    %157 = arith.mulf %156, %152 : vector<17x128xf32>
    %158 = arith.mulf %157, %152 : vector<17x128xf32>
    %159 = arith.addf %152, %158 : vector<17x128xf32>
    %cst_74 = arith.constant 0.797884583 : f32
    %160 = vector.broadcast %cst_74 : f32 to vector<17x128xf32>
    %161 = arith.mulf %160, %159 : vector<17x128xf32>
    %162 = math.tanh %161 : vector<17x128xf32>
    %cst_75 = arith.constant 1.000000e+00 : f32
    %163 = vector.broadcast %cst_75 : f32 to vector<17x128xf32>
    %164 = arith.addf %163, %162 : vector<17x128xf32>
    %165 = arith.mulf %154, %164 : vector<17x128xf32>
    %166 = arith.truncf %165 : vector<17x128xf32> to vector<17x128xbf16>
    %c0_76 = arith.constant 0 : index
    %c0_77 = arith.constant 0 : index
    %167 = vector.load %arg12[%c0_76, %c0_77] : memref<128x32xbf16, #tpu.memory_space<vmem>>, vector<128x32xbf16>
    %cst_78 = arith.constant dense<0.000000e+00> : vector<17x32xf32>
    %168 = tpu.matmul %166, %167, %cst_78 {dimension_numbers = #tpu.dot_dimension_numbers<[1], [0], [0], [1], [0, 0, 1, 1], [], []>} : vector<17x128xbf16>, vector<128x32xbf16>, vector<17x32xf32> -> vector<17x32xf32>
    %169 = arith.addf %122, %168 : vector<17x32xf32>
    %c0_79 = arith.constant 0 : index
    %c0_80 = arith.constant 0 : index
    %170 = vector.load %arg13[%c0_79, %c0_80] : memref<1x32xf32, #tpu.memory_space<vmem>>, vector<1x32xf32>
    %171 = vector.broadcast %170 : vector<1x32xf32> to vector<17x32xf32>
    %172 = arith.addf %169, %171 : vector<17x32xf32>
    %c0_81 = arith.constant 0 : index
    %173 = arith.index_cast %120 : i32 to index
    %c0_82 = arith.constant 0 : index
    %174 = vector.load %arg14[%c0_81, %173, %c0_82] : memref<1x17x32xf32, #tpu.memory_space<vmem>>, vector<1x17x32xf32>
    %175 = vector.shape_cast %174 : vector<1x17x32xf32> to vector<17x32xf32>
    %176 = vector.shape_cast %172 : vector<17x32xf32> to vector<1x17x32xf32>
    tpu.vector_store %arg14[%c0_81, %173, %c0_82], %176 {strides = array<i32>} : memref<1x17x32xf32, #tpu.memory_space<vmem>>, vector<1x17x32xf32>,
    %c1_i32_83 = arith.constant 1 : i32
    return
  }
  func.func @transform_0(%arg0: i32) -> (i32, i32, i32) {
    %c0_i32 = arith.constant 0 : i32
    %c0_i32_0 = arith.constant 0 : i32
    %c0_i32_1 = arith.constant 0 : i32
    return %arg0, %c0_i32, %c0_i32_0 : i32, i32, i32
  }
  func.func @transform_1(%arg0: i32) -> (i32, i32) {
    %c0_i32 = arith.constant 0 : i32
    %c0_i32_0 = arith.constant 0 : i32
    %c0_i32_1 = arith.constant 0 : i32
    return %c0_i32, %c0_i32_0 : i32, i32
  }
  func.func @transform_2(%arg0: i32) -> (i32, i32) {
    %c0_i32 = arith.constant 0 : i32
    %c0_i32_0 = arith.constant 0 : i32
    %c0_i32_1 = arith.constant 0 : i32
    return %c0_i32, %c0_i32_0 : i32, i32
  }
  func.func @transform_3(%arg0: i32) -> (i32, i32) {
    %c0_i32 = arith.constant 0 : i32
    %c0_i32_0 = arith.constant 0 : i32
    %c0_i32_1 = arith.constant 0 : i32
    return %c0_i32, %c0_i32_0 : i32, i32
  }
  func.func @transform_4(%arg0: i32) -> (i32, i32) {
    %c0_i32 = arith.constant 0 : i32
    %c0_i32_0 = arith.constant 0 : i32
    %c0_i32_1 = arith.constant 0 : i32
    return %c0_i32, %c0_i32_0 : i32, i32
  }
  func.func @transform_5(%arg0: i32) -> (i32, i32) {
    %c0_i32 = arith.constant 0 : i32
    %c0_i32_0 = arith.constant 0 : i32
    %c0_i32_1 = arith.constant 0 : i32
    return %c0_i32, %c0_i32_0 : i32, i32
  }
  func.func @transform_6(%arg0: i32) -> (i32, i32) {
    %c0_i32 = arith.constant 0 : i32
    %c0_i32_0 = arith.constant 0 : i32
    %c0_i32_1 = arith.constant 0 : i32
    return %c0_i32, %c0_i32_0 : i32, i32
  }
  func.func @transform_7(%arg0: i32) -> (i32, i32) {
    %c0_i32 = arith.constant 0 : i32
    %c0_i32_0 = arith.constant 0 : i32
    %c0_i32_1 = arith.constant 0 : i32
    return %c0_i32, %c0_i32_0 : i32, i32
  }
  func.func @transform_8(%arg0: i32) -> (i32, i32) {
    %c0_i32 = arith.constant 0 : i32
    %c0_i32_0 = arith.constant 0 : i32
    %c0_i32_1 = arith.constant 0 : i32
    return %c0_i32, %c0_i32_0 : i32, i32
  }
  func.func @transform_9(%arg0: i32) -> (i32, i32) {
    %c0_i32 = arith.constant 0 : i32
    %c0_i32_0 = arith.constant 0 : i32
    %c0_i32_1 = arith.constant 0 : i32
    return %c0_i32, %c0_i32_0 : i32, i32
  }
  func.func @transform_10(%arg0: i32) -> (i32, i32) {
    %c0_i32 = arith.constant 0 : i32
    %c0_i32_0 = arith.constant 0 : i32
    %c0_i32_1 = arith.constant 0 : i32
    return %c0_i32, %c0_i32_0 : i32, i32
  }
  func.func @transform_11(%arg0: i32) -> (i32, i32) {
    %c0_i32 = arith.constant 0 : i32
    %c0_i32_0 = arith.constant 0 : i32
    %c0_i32_1 = arith.constant 0 : i32
    return %c0_i32, %c0_i32_0 : i32, i32
  }
  func.func @transform_12(%arg0: i32) -> (i32, i32) {
    %c0_i32 = arith.constant 0 : i32
    %c0_i32_0 = arith.constant 0 : i32
    %c0_i32_1 = arith.constant 0 : i32
    return %c0_i32, %c0_i32_0 : i32, i32
  }
  func.func @transform_13(%arg0: i32) -> (i32, i32, i32) {
    %c0_i32 = arith.constant 0 : i32
    %c0_i32_0 = arith.constant 0 : i32
    %c0_i32_1 = arith.constant 0 : i32
    return %arg0, %c0_i32, %c0_i32_0 : i32, i32, i32
  }
}

module attributes {stable_mosaic.version = 11 : i64} {
  func.func @_head_kernel(%arg0: i32, %arg1: memref<2x32xf32, #tpu.memory_space<vmem>>, %arg2: memref<1x32xf32, #tpu.memory_space<vmem>>, %arg3: memref<1x32xf32, #tpu.memory_space<vmem>>, %arg4: memref<32x10xbf16, #tpu.memory_space<vmem>>, %arg5: memref<1x10xf32, #tpu.memory_space<vmem>>, %arg6: memref<2x10xf32, #tpu.memory_space<vmem>>) attributes {dimension_semantics = [#tpu.dimension_semantics<arbitrary>], iteration_bounds = array<i64: 1>, scalar_prefetch = 0 : i64, scratch_operands = 0 : i64, tpu.core_type = #tpu.core_type<tc>, window_params = [{pipeline_mode = #tpu.pipeline_mode<synchronous>, transform_indices = @transform_0, window_bounds = array<i64: 2, 32>}, {pipeline_mode = #tpu.pipeline_mode<synchronous>, transform_indices = @transform_1, window_bounds = array<i64: 1, 32>}, {pipeline_mode = #tpu.pipeline_mode<synchronous>, transform_indices = @transform_2, window_bounds = array<i64: 1, 32>}, {pipeline_mode = #tpu.pipeline_mode<synchronous>, transform_indices = @transform_3, window_bounds = array<i64: 32, 10>}, {pipeline_mode = #tpu.pipeline_mode<synchronous>, transform_indices = @transform_4, window_bounds = array<i64: 1, 10>}, {pipeline_mode = #tpu.pipeline_mode<synchronous>, transform_indices = @transform_5, window_bounds = array<i64: 2, 10>}]} {
    %c0 = arith.constant 0 : index
    %c0_0 = arith.constant 0 : index
    %0 = vector.load %arg1[%c0, %c0_0] : memref<2x32xf32, #tpu.memory_space<vmem>>, vector<2x32xf32>
    %c0_1 = arith.constant 0 : index
    %c0_2 = arith.constant 0 : index
    %1 = vector.load %arg2[%c0_1, %c0_2] : memref<1x32xf32, #tpu.memory_space<vmem>>, vector<1x32xf32>
    %c0_3 = arith.constant 0 : index
    %c0_4 = arith.constant 0 : index
    %2 = vector.load %arg3[%c0_3, %c0_4] : memref<1x32xf32, #tpu.memory_space<vmem>>, vector<1x32xf32>
    %cst = arith.constant dense<0.000000e+00> : vector<2xf32>
    %3 = vector.multi_reduction <add>, %0, %cst [1] : vector<2x32xf32> to vector<2xf32>
    %4 = vector.shape_cast %3 : vector<2xf32> to vector<2x1xf32>
    %cst_5 = arith.constant 3.200000e+01 : f32
    %5 = vector.broadcast %cst_5 : f32 to vector<2x1xf32>
    %6 = arith.divf %4, %5 : vector<2x1xf32>
    %7 = vector.broadcast %6 : vector<2x1xf32> to vector<2x32xf32>
    %8 = arith.subf %0, %7 : vector<2x32xf32>
    %9 = arith.mulf %8, %8 : vector<2x32xf32>
    %cst_6 = arith.constant dense<0.000000e+00> : vector<2xf32>
    %10 = vector.multi_reduction <add>, %9, %cst_6 [1] : vector<2x32xf32> to vector<2xf32>
    %11 = vector.shape_cast %10 : vector<2xf32> to vector<2x1xf32>
    %cst_7 = arith.constant 3.200000e+01 : f32
    %12 = vector.broadcast %cst_7 : f32 to vector<2x1xf32>
    %13 = arith.divf %11, %12 : vector<2x1xf32>
    %14 = vector.broadcast %6 : vector<2x1xf32> to vector<2x32xf32>
    %15 = arith.subf %0, %14 : vector<2x32xf32>
    %cst_8 = arith.constant 9.99999997E-7 : f32
    %16 = vector.broadcast %cst_8 : f32 to vector<2x1xf32>
    %17 = arith.addf %13, %16 : vector<2x1xf32>
    %18 = math.rsqrt %17 : vector<2x1xf32>
    %19 = vector.broadcast %18 : vector<2x1xf32> to vector<2x32xf32>
    %20 = arith.mulf %15, %19 : vector<2x32xf32>
    %21 = vector.broadcast %1 : vector<1x32xf32> to vector<2x32xf32>
    %22 = arith.mulf %20, %21 : vector<2x32xf32>
    %23 = vector.broadcast %2 : vector<1x32xf32> to vector<2x32xf32>
    %24 = arith.addf %22, %23 : vector<2x32xf32>
    %25 = arith.truncf %24 : vector<2x32xf32> to vector<2x32xbf16>
    %c0_9 = arith.constant 0 : index
    %c0_10 = arith.constant 0 : index
    %26 = vector.load %arg4[%c0_9, %c0_10] : memref<32x10xbf16, #tpu.memory_space<vmem>>, vector<32x10xbf16>
    %cst_11 = arith.constant dense<0.000000e+00> : vector<2x10xf32>
    %27 = tpu.matmul %25, %26, %cst_11 {dimension_numbers = #tpu.dot_dimension_numbers<[1], [0], [0], [1], [0, 0, 1, 1], [], []>} : vector<2x32xbf16>, vector<32x10xbf16>, vector<2x10xf32> -> vector<2x10xf32>
    %c0_12 = arith.constant 0 : index
    %c0_13 = arith.constant 0 : index
    %28 = vector.load %arg5[%c0_12, %c0_13] : memref<1x10xf32, #tpu.memory_space<vmem>>, vector<1x10xf32>
    %29 = vector.broadcast %28 : vector<1x10xf32> to vector<2x10xf32>
    %30 = arith.addf %27, %29 : vector<2x10xf32>
    %c0_14 = arith.constant 0 : index
    %c0_15 = arith.constant 0 : index
    %31 = vector.load %arg6[%c0_14, %c0_15] : memref<2x10xf32, #tpu.memory_space<vmem>>, vector<2x10xf32>
    tpu.vector_store %arg6[%c0_14, %c0_15], %30 {strides = array<i32>} : memref<2x10xf32, #tpu.memory_space<vmem>>, vector<2x10xf32>,
    return
  }
  func.func @transform_0(%arg0: i32) -> (i32, i32) {
    %c0_i32 = arith.constant 0 : i32
    %c0_i32_0 = arith.constant 0 : i32
    %c0_i32_1 = arith.constant 0 : i32
    return %c0_i32, %c0_i32_0 : i32, i32
  }
  func.func @transform_1(%arg0: i32) -> (i32, i32) {
    %c0_i32 = arith.constant 0 : i32
    %c0_i32_0 = arith.constant 0 : i32
    %c0_i32_1 = arith.constant 0 : i32
    return %c0_i32, %c0_i32_0 : i32, i32
  }
  func.func @transform_2(%arg0: i32) -> (i32, i32) {
    %c0_i32 = arith.constant 0 : i32
    %c0_i32_0 = arith.constant 0 : i32
    %c0_i32_1 = arith.constant 0 : i32
    return %c0_i32, %c0_i32_0 : i32, i32
  }
  func.func @transform_3(%arg0: i32) -> (i32, i32) {
    %c0_i32 = arith.constant 0 : i32
    %c0_i32_0 = arith.constant 0 : i32
    %c0_i32_1 = arith.constant 0 : i32
    return %c0_i32, %c0_i32_0 : i32, i32
  }
  func.func @transform_4(%arg0: i32) -> (i32, i32) {
    %c0_i32 = arith.constant 0 : i32
    %c0_i32_0 = arith.constant 0 : i32
    %c0_i32_1 = arith.constant 0 : i32
    return %c0_i32, %c0_i32_0 : i32, i32
  }
  func.func @transform_5(%arg0: i32) -> (i32, i32) {
    %c0_i32 = arith.constant 0 : i32
    %c0_i32_0 = arith.constant 0 : i32
    %c0_i32_1 = arith.constant 0 : i32
    return %c0_i32, %c0_i32_0 : i32, i32
  }
}

</mosaic_0001>

<llo_original>
// kernel: modified_vit_forward.4
$region0: #{modified_vit_forward.4}
  #allocation0 [shape = 'u32[]', space=smem, size = 0x4, offset = 0x4, fixed_abs, tag = 'smem constant byte address 0x4 - core index']
  #allocation1 [shape = 'u32[144,128]{1,0:T(1,128)}', space=vmem, size = 0x12000, scoped, tag = 'internal scratch']
  %s0 = inlined_call_operand.vmem [shape: bf16[2,16,64], index: 0, kind: input, shape index: {}]
  %s1 = inlined_call_operand.vmem [shape: bf16[64,32], index: 1, kind: input, shape index: {}]
  %s2 = inlined_call_operand.vmem [shape: f32[1,32], index: 2, kind: input, shape index: {}]
  %s3 = inlined_call_operand.vmem [shape: f32[16,32], index: 3, kind: input, shape index: {}]
  %s4 = inlined_call_operand.vmem [shape: f32[1,32], index: 4, kind: input, shape index: {}]
  %s5 = inlined_call_operand.vmem [shape: f32[2,17,32], index: 5, kind: output, shape index: {}]
  %s6 = sld [smem:[#allocation0]]
  $region53: #{modified_vit_forward.4} parent=0
    _
  %s8 = ssub.s32 1, %s6
  %s9 = scalar_select 0, %s8, %s6
  loop: start=0, step=1, limit=4
  $region2: #{modified_vit_forward.4} parent=0 // loop_pre_header
    _
  $region3: #{modified_vit_forward.4} parent=0 // loop_header
    %s11 = sphi 0, %s15
    %p12 = scmp.ge.s32.totalorder %s11, 4
    %s21 = sphi 0, %s23
    %s24 = sphi 0, %s21
    %s25 = sphi 0, %s24
    %s41 = sphi 0, %s25
    %s45 = sphi 0, %s45
    %s47 = sphi 0, %s45
    %s48 = sphi 0, %s47
    %s62 = sphi 0, %s48
    %s66 = sphi 0, %s66
    %s68 = sphi 0, %s66
    %s69 = sphi 0, %s68
    %s83 = sphi 0, %s69
    %s87 = sphi 0, %s87
    %s89 = sphi 0, %s87
    %s90 = sphi 0, %s89
    %s104 = sphi 0, %s90
    %s108 = sphi 0, %s108
    %s110 = sphi 0, %s108
    %s111 = sphi 0, %s110
    %s125 = sphi 0, %s111
    %s131 = sphi 0, %s133
    %s134 = sphi 0, %s131
    %s135 = sphi 0, %s134
    %s151 = sphi 0, %s135
  $region4: #{modified_vit_forward.4} parent=0 // loop_header_branch
    %14 = sbr.rel (%p12) target = $region8
  $region5: #{modified_vit_forward.4} parent=0 // loop_body
    %s16 = ssub.s32 %s11, 1
    %s17 = ssub.s32 %s11, 2
    %s18 = sadd.s32 %s11, 1
    %s19 = ssub.s32 %s11, %s18
    %p20 = scmp.eq.s32.totalorder %s19, 0
    %s22 = sadd.s32 %s21, 1
    %s23 = scalar_select %p20, %s21, %s22
    %p26 = pneg %p20
    %p27 = scmp.eq.s32.totalorder %s11, 1
    %p28 = por %p26, %p27
    %p29 = scmp.ne.s32.totalorder %s21, %s24
    %p30 = scmp.eq.s32.totalorder %s11, 0
    %p31 = por %p29, %p30
    %p32 = scmp.ne.s32.totalorder %s21, %s24
    %p33 = scmp.eq.s32.totalorder %s16, 1
    %p34 = por %p32, %p33
    %p35 = scmp.ne.s32.totalorder %s24, %s25
    %p36 = scmp.eq.s32.totalorder %s16, 0
    %p37 = por %p35, %p36
    %p38 = scmp.ne.s32.totalorder %s24, %s25
    %p39 = scmp.eq.s32.totalorder %s17, 1
    %p40 = por %p38, %p39
    %p42 = scmp.ne.s32.totalorder %s25, %s41
    %p43 = scmp.eq.s32.totalorder %s17, 0
    %p44 = por %p42, %p43
    %s46 = sadd.s32 %s45, 1
    %p49 = scmp.eq.s32.totalorder %s11, 1
    %p50 = scmp.ne.s32.totalorder %s45, %s47
    %p51 = scmp.eq.s32.totalorder %s11, 0
    %p52 = por %p50, %p51
    %p53 = scmp.ne.s32.totalorder %s45, %s47
    %p54 = scmp.eq.s32.totalorder %s16, 1
    %p55 = por %p53, %p54
    %p56 = scmp.ne.s32.totalorder %s47, %s48
    %p57 = scmp.eq.s32.totalorder %s16, 0
    %p58 = por %p56, %p57
    %p59 = scmp.ne.s32.totalorder %s47, %s48
    %p60 = scmp.eq.s32.totalorder %s17, 1
    %p61 = por %p59, %p60
    %p63 = scmp.ne.s32.totalorder %s48, %s62
    %p64 = scmp.eq.s32.totalorder %s17, 0
    %p65 = por %p63, %p64
    %s67 = sadd.s32 %s66, 1
    %p70 = scmp.eq.s32.totalorder %s11, 1
    %p71 = scmp.ne.s32.totalorder %s66, %s68
    %p72 = scmp.eq.s32.totalorder %s11, 0
    %p73 = por %p71, %p72
    %p74 = scmp.ne.s32.totalorder %s66, %s68
    %p75 = scmp.eq.s32.totalorder %s16, 1
    %p76 = por %p74, %p75
    %p77 = scmp.ne.s32.totalorder %s68, %s69
    %p78 = scmp.eq.s32.totalorder %s16, 0
    %p79 = por %p77, %p78
    %p80 = scmp.ne.s32.totalorder %s68, %s69
    %p81 = scmp.eq.s32.totalorder %s17, 1
    %p82 = por %p80, %p81
    %p84 = scmp.ne.s32.totalorder %s69, %s83
    %p85 = scmp.eq.s32.totalorder %s17, 0
    %p86 = por %p84, %p85
    %s88 = sadd.s32 %s87, 1
    %p91 = scmp.eq.s32.totalorder %s11, 1
    %p92 = scmp.ne.s32.totalorder %s87, %s89
    %p93 = scmp.eq.s32.totalorder %s11, 0
    %p94 = por %p92, %p93
    %p95 = scmp.ne.s32.totalorder %s87, %s89
    %p96 = scmp.eq.s32.totalorder %s16, 1
    %p97 = por %p95, %p96
    %p98 = scmp.ne.s32.totalorder %s89, %s90
    %p99 = scmp.eq.s32.totalorder %s16, 0
    %p100 = por %p98, %p99
    %p101 = scmp.ne.s32.totalorder %s89, %s90
    %p102 = scmp.eq.s32.totalorder %s17, 1
    %p103 = por %p101, %p102
    %p105 = scmp.ne.s32.totalorder %s90, %s104
    %p106 = scmp.eq.s32.totalorder %s17, 0
    %p107 = por %p105, %p106
    %s109 = sadd.s32 %s108, 1
    %p112 = scmp.eq.s32.totalorder %s11, 1
    %p113 = scmp.ne.s32.totalorder %s108, %s110
    %p114 = scmp.eq.s32.totalorder %s11, 0
    %p115 = por %p113, %p114
    %p116 = scmp.ne.s32.totalorder %s108, %s110
    %p117 = scmp.eq.s32.totalorder %s16, 1
    %p118 = por %p116, %p117
    %p119 = scmp.ne.s32.totalorder %s110, %s111
    %p120 = scmp.eq.s32.totalorder %s16, 0
    %p121 = por %p119, %p120
    %p122 = scmp.ne.s32.totalorder %s110, %s111
    %p123 = scmp.eq.s32.totalorder %s17, 1
    %p124 = por %p122, %p123
    %p126 = scmp.ne.s32.totalorder %s111, %s125
    %p127 = scmp.eq.s32.totalorder %s17, 0
    %p128 = por %p126, %p127
    %s129 = ssub.s32 %s11, %s18
    %p130 = scmp.eq.s32.totalorder %s129, 0
    %s132 = sadd.s32 %s131, 1
    %s133 = scalar_select %p130, %s131, %s132
    %p136 = pneg %p130
    %p137 = scmp.eq.s32.totalorder %s11, 1
    %p138 = por %p136, %p137
    %p139 = scmp.ne.s32.totalorder %s131, %s134
    %p140 = scmp.eq.s32.totalorder %s11, 0
    %p141 = por %p139, %p140
    %p142 = scmp.ne.s32.totalorder %s131, %s134
    %p143 = scmp.eq.s32.totalorder %s16, 1
    %p144 = por %p142, %p143
    %p145 = scmp.ne.s32.totalorder %s134, %s135
    %p146 = scmp.eq.s32.totalorder %s16, 0
    %p147 = por %p145, %p146
    %p148 = scmp.ne.s32.totalorder %s134, %s135
    %p149 = scmp.eq.s32.totalorder %s17, 1
    %p150 = por %p148, %p149
    %p152 = scmp.ne.s32.totalorder %s135, %s151
    %p153 = scmp.eq.s32.totalorder %s17, 0
    %p154 = por %p152, %p153
    %p155 = scmp.le.s32.totalorder 1, %s11
    %p156 = scmp.lt.s32.totalorder %s11, 3
    %p157 = pnand %p155, %p156
    %p158 = pneg %p157
    // Predicated region
    $region9: #{modified_vit_forward.4} parent=5 // pred_check
      _
    $region10: #{modified_vit_forward.4} parent=5 // pred_check_branch
      %160 = sbr.rel (%p157) target = $region12
    $region11: #{modified_vit_forward.4} parent=5 // pred_region
      %s161 = ssub.s32 %s11, 1
      // Predicated region
      $region13: #{modified_vit_forward.4} parent=11 // pred_check
        %p162 = pneg %p58
      $region14: #{modified_vit_forward.4} parent=11 // pred_check_branch
        %164 = sbr.rel (%p162) target = $region16
      $region15: #{modified_vit_forward.4} parent=11 // pred_region
        _
      $region16: #{modified_vit_forward.4} parent=11 // pred_fallthru
        _
      // Predicated region
      $region17: #{modified_vit_forward.4} parent=11 // pred_check
        %p165 = pneg %p79
      $region18: #{modified_vit_forward.4} parent=11 // pred_check_branch
        %167 = sbr.rel (%p165) target = $region20
      $region19: #{modified_vit_forward.4} parent=11 // pred_region
        _
      $region20: #{modified_vit_forward.4} parent=11 // pred_fallthru
        _
      // Predicated region
      $region21: #{modified_vit_forward.4} parent=11 // pred_check
        %p168 = pneg %p100
      $region22: #{modified_vit_forward.4} parent=11 // pred_check_branch
        %170 = sbr.rel (%p168) target = $region24
      $region23: #{modified_vit_forward.4} parent=11 // pred_region
        _
      $region24: #{modified_vit_forward.4} parent=11 // pred_fallthru
        _
      // Predicated region
      $region25: #{modified_vit_forward.4} parent=11 // pred_check
        %p171 = pneg %p121
      $region26: #{modified_vit_forward.4} parent=11 // pred_check_branch
        %173 = sbr.rel (%p171) target = $region28
      $region27: #{modified_vit_forward.4} parent=11 // pred_region
        _
      $region28: #{modified_vit_forward.4} parent=11 // pred_fallthru
        _
    $region12: #{modified_vit_forward.4} parent=5 // pred_fallthru
      _
    %p174 = scmp.lt.s32.totalorder %s11, 2
    // Predicated region
    $region29: #{modified_vit_forward.4} parent=5 // pred_check
      %p175 = pneg %p174
    $region30: #{modified_vit_forward.4} parent=5 // pred_check_branch
      %177 = sbr.rel (%p175) target = $region32
    $region31: #{modified_vit_forward.4} parent=5 // pred_region
      // Predicated region
      $region33: #{modified_vit_forward.4} parent=31 // pred_check
        %p178 = pneg %p31
      $region34: #{modified_vit_forward.4} parent=31 // pred_check_branch
        %180 = sbr.rel (%p178) target = $region36
      $region35: #{modified_vit_forward.4} parent=31 // pred_region
        %p181 = scmp.lt.s32.totalorder %s11, 1
        %s182 = scalar_select %p181, %s11, 1
        %s183 = smul.addr %s182, 2
        %s184 = smul.addr %s183, 4
        %s185 = scalar_lea.vmem %s0, %s184
      $region36: #{modified_vit_forward.4} parent=31 // pred_fallthru
        _
    $region32: #{modified_vit_forward.4} parent=5 // pred_fallthru
      _
    %p186 = scmp.le.s32.totalorder 1, %s11
    %p187 = scmp.lt.s32.totalorder %s11, 3
    %p188 = pnand %p186, %p187
    %p189 = pneg %p188
    // Predicated region
    $region37: #{modified_vit_forward.4} parent=5 // pred_check
      _
    $region38: #{modified_vit_forward.4} parent=5 // pred_check_branch
      %191 = sbr.rel (%p188) target = $region40
    $region39: #{modified_vit_forward.4} parent=5 // pred_region
      %s192 = ssub.s32 %s11, 1
      %p193 = scmp.lt.s32.totalorder %s16, 1
      %s194 = scalar_select %p193, %s16, 1
      %s195 = smul.addr %s194, 2
      %s196 = smul.addr %s195, 4
      %s197 = scalar_lea.vmem %s0, %s196
      %p198 = pneg %p37
      %p199 = pneg %p34
      %p200 = pneg %p58
      %p201 = pneg %p55
      %p202 = pneg %p79
      %p203 = pneg %p76
      %p204 = pneg %p100
      %p205 = pneg %p97
      %p206 = pneg %p121
      %p207 = pneg %p118
      %p208 = pneg %p147
      %p209 = pneg %p144
      %p210 = scmp.lt.s32.totalorder %s16, 1
      %s211 = scalar_select %p210, %s16, 1
      %s212 = smul.addr %s211, 3
      %s213 = smul.addr %s212, 8
      %s214 = scalar_lea.vmem %s5, %s213
      %p215 = scmp.lt.s32.totalorder %s16, 1
      %s216 = scalar_select %p215, %s16, 1
      %s217 = smul.addr %s216, 2
      %s218 = smul.addr %s217, 4
      %s219 = scalar_lea.vmem %s0, %s218
      %p220 = scmp.lt.s32.totalorder %s16, 1
      %s221 = scalar_select %p220, %s16, 1
      %s222 = smul.addr %s221, 3
      %s223 = smul.addr %s222, 8
      %s224 = scalar_lea.vmem %s5, %s223
      %v226 = vld [vmem:[%s219] sm:$0xf]
      %v227 = vld [vmem:[%s219 + $0x4] sm:$0xf]
      %v228 = vld [vmem:[%s1] sm:$0xf]
      %v229 = vld [vmem:[%s1 + $0x4] sm:$0xf]
      %v230 = vld [vmem:[%s1 + $0x8] sm:$0xf]
      %v231 = vld [vmem:[%s1 + $0xc] sm:$0xf]
      %v232 = vld [vmem:[%s1 + $0x10] sm:$0xf]
      %v233 = vld [vmem:[%s1 + $0x14] sm:$0xf]
      %v234 = vld [vmem:[%s1 + $0x18] sm:$0xf]
      %v235 = vld [vmem:[%s1 + $0x1c] sm:$0xf]
      %v236 = vld [vmem:[%s2] sm:$0x1]
      %v238 = vlaneseq
      %v239 = vshrl.u32 %v238, 7
      %v240 = vsub.s32 0, %v239
      %v241 = vrot.slane %v236, %v240
      %v245 = vunpack.c.l.b16 %v226
      %v246 = vunpack.c.l.b16 %v227
      %v247 = vpack.c.b16 %v246, %v245
      %v256 = vunpack.c.l.b16 %v228
      %v257 = vunpack.c.l.b16 %v229
      %v258 = vunpack.c.l.b16 %v230
      %v259 = vunpack.c.l.b16 %v231
      %v260 = vunpack.c.l.b16 %v232
      %v261 = vunpack.c.l.b16 %v233
      %v262 = vunpack.c.l.b16 %v234
      %v263 = vunpack.c.l.b16 %v235
      %v264 = vpack.c.b16 %v257, %v256
      %v265 = vpack.c.b16 %v259, %v258
      %v266 = vpack.c.b16 %v261, %v260
      %v267 = vpack.c.b16 %v263, %v262
      %vm272 = vcmask 523264
      %v274 = vsel %vm272, %v247, 0
      %276 = vmatprep.subr.bf16.mxu0 0
      %277 = vmatpush1.bf16.msra.mxu0 %v264
      %278 = vmatprep.subr.bf16.mxu0 0
      %279 = vmatpush1.bf16.msra.mxu0 %v265
      %280 = vmatprep.subr.bf16.mxu0 0
      %281 = vmatpush1.bf16.msra.mxu0 %v266
      %282 = vmatprep.subr.bf16.mxu0 0
      %283 = vmatpush1.bf16.msra.mxu0 %v267
      %284 = vmatprep.subr.bf16.mxu0 0
      %285 = vmatpush1.bf16.msra.mxu0 0
      %286 = vmatprep.subr.bf16.mxu0 0
      %287 = vmatpush1.bf16.msra.mxu0 0
      %288 = vmatprep.subr.bf16.mxu0 0
      %289 = vmatpush1.bf16.msra.mxu0 0
      %290 = vmatprep.subr.bf16.mxu0 0
      %291 = vmatpush1.bf16.msra.mxu0 0
      %292 = vmatprep.subr.bf16.mxu0 0
      %293 = vmatpush1.bf16.msra.mxu0 0
      %294 = vmatprep.subr.bf16.mxu0 0
      %295 = vmatpush1.bf16.msra.mxu0 0
      %296 = vmatprep.subr.bf16.mxu0 0
      %297 = vmatpush1.bf16.msra.mxu0 0
      %298 = vmatprep.subr.bf16.mxu0 0
      %299 = vmatpush1.bf16.msra.mxu0 0
      %300 = vmatprep.subr.bf16.mxu0 0
      %301 = vmatpush1.bf16.msra.mxu0 0
      %302 = vmatprep.subr.bf16.mxu0 0
      %303 = vmatpush1.bf16.msra.mxu0 0
      %304 = vmatprep.subr.bf16.mxu0 0
      %305 = vmatpush1.bf16.msra.mxu0 0
      %306 = vmatprep.subr.bf16.mxu0 0
      %307 = vmatpush1.bf16.msra.mxu0 0
      %308 = vmatprep.mubr.bf16.mxu0 0
      %309 = vmatmul.mubr.bf16.gmra.mrb[0].mxu0 %v274
      %v310 = vpop.f32.mrb[0].mxu0
      %v311 = vadd.f32 %v241, %v310
      %v312 = vpop.f32.mrb[0].mxu0
      %v313 = vpop.f32.mrb[0].mxu0
      %v314 = vadd.f32 %v241, %v313
      %v315 = vpop.f32.mrb[0].mxu0
      %316 = vdwg.mxu0
      %v317 = vld [vmem:[%s3] sm:$0xff]
      %v318 = vld [vmem:[%s3 + $0x8] sm:$0xff]
      %v319 = vadd.f32 %v311, %v317
      %v320 = vadd.f32 %v314, %v318
      %v321 = vld [vmem:[%s4] sm:$0x1]
      %vm322 = vcmask 253952
      %323 = vst.msk [vmem:[%s224] sm:$0x1] %vm322, %v321
      %vm324 = vcmask 261120
      %325 = vst.msk [vmem:[%s224 + $0x1] sm:$0xff] %vm324, %v319
      %326 = vst.msk [vmem:[%s224 + $0x9] sm:$0xff] %vm324, %v320
      %p327 = scmp.lt.s32.totalorder %s16, 1
      %s328 = scalar_select %p327, %s16, 1
      %s329 = smul.addr %s328, 3
      %s330 = smul.addr %s329, 8
      %s331 = scalar_lea.vmem %s5, %s330
      // Predicated region
      $region41: #{modified_vit_forward.4} parent=39 // pred_check
        %p332 = pneg %p144
      $region42: #{modified_vit_forward.4} parent=39 // pred_check_branch
        %334 = sbr.rel (%p332) target = $region44
      $region43: #{modified_vit_forward.4} parent=39 // pred_region
        _
      $region44: #{modified_vit_forward.4} parent=39 // pred_fallthru
        _
    $region40: #{modified_vit_forward.4} parent=5 // pred_fallthru
      _
    %p335 = scmp.le.s32.totalorder 2, %s11
    // Predicated region
    $region45: #{modified_vit_forward.4} parent=5 // pred_check
      %p336 = pneg %p335
    $region46: #{modified_vit_forward.4} parent=5 // pred_check_branch
      %338 = sbr.rel (%p336) target = $region48
    $region47: #{modified_vit_forward.4} parent=5 // pred_region
      %s339 = ssub.s32 %s11, 2
      // Predicated region
      $region49: #{modified_vit_forward.4} parent=47 // pred_check
        %p340 = pneg %p150
      $region50: #{modified_vit_forward.4} parent=47 // pred_check_branch
        %342 = sbr.rel (%p340) target = $region52
      $region51: #{modified_vit_forward.4} parent=47 // pred_region
        %p343 = scmp.lt.s32.totalorder %s17, 1
        %s344 = scalar_select %p343, %s17, 1
        %s345 = smul.addr %s344, 3
        %s346 = smul.addr %s345, 8
        %s347 = scalar_lea.vmem %s5, %s346
      $region52: #{modified_vit_forward.4} parent=47 // pred_fallthru
        _
    $region48: #{modified_vit_forward.4} parent=5 // pred_fallthru
      _
  $region6: #{modified_vit_forward.4} parent=0 // loop_footer
    %s15 = sadd.s32 1, %s11
  $region7: #{modified_vit_forward.4} parent=0 // loop_footer_branch
    %10 = sbr.rel target = $region3
  $region8: #{modified_vit_forward.4} parent=0 // loop_exit
    _

// kernel: modified_vit_forward.7
$region0: #{modified_vit_forward.7}
  #allocation0 [shape = 'u32[]', space=smem, size = 0x4, offset = 0x4, fixed_abs, tag = 'smem constant byte address 0x4 - core index']
  #allocation1 [shape = 'u32[144,128]{1,0:T(1,128)}', space=vmem, size = 0x12000, scoped, tag = 'internal scratch']
  %s0 = inlined_call_operand.vmem [shape: f32[2,32], index: 0, kind: input, shape index: {}]
  %s1 = inlined_call_operand.vmem [shape: f32[1,32], index: 1, kind: input, shape index: {}]
  %s2 = inlined_call_operand.vmem [shape: f32[1,32], index: 2, kind: input, shape index: {}]
  %s3 = inlined_call_operand.vmem [shape: bf16[32,10], index: 3, kind: input, shape index: {}]
  %s4 = inlined_call_operand.vmem [shape: f32[1,10], index: 4, kind: input, shape index: {}]
  %s5 = inlined_call_operand.hbm [shape: f32[2,10], index: 5, kind: output, shape index: {}]
  %s6 = sld [smem:[#allocation0]]
  $region30: #{modified_vit_forward.7} parent=0
    _
  %s8 = ssub.s32 1, %s6
  %s9 = scalar_select 0, %s8, %s6
  $region1: #{modified_vit_forward.7} parent=0
    #allocation2 [shape = 'u8[1024]{0}', space=vmem, size = 0x400, scoped, tag = 'output window, operand 0, single buffered']
    #allocation3 [shape = 's32[1]{0}', space=sflag, size = 0x4, scoped, tag = 'scoped memory for modified_vit_forward.7']
    %10 = vsyncpa [#allocation3], 0
    // Predicated region
    $region2: #{modified_vit_forward.7} parent=1 // pred_check
      _
    $region3: #{modified_vit_forward.7} parent=1 // pred_check_branch
      %12 = sbr.rel (0) target = $region5
    $region4: #{modified_vit_forward.7} parent=1 // pred_region
      _
    $region5: #{modified_vit_forward.7} parent=1 // pred_fallthru
      _
    // Predicated region
    $region6: #{modified_vit_forward.7} parent=1 // pred_check
      _
    $region7: #{modified_vit_forward.7} parent=1 // pred_check_branch
      %14 = sbr.rel (0) target = $region9
    $region8: #{modified_vit_forward.7} parent=1 // pred_region
      _
    $region9: #{modified_vit_forward.7} parent=1 // pred_fallthru
      _
    // Predicated region
    $region10: #{modified_vit_forward.7} parent=1 // pred_check
      _
    $region11: #{modified_vit_forward.7} parent=1 // pred_check_branch
      %16 = sbr.rel (0) target = $region13
    $region12: #{modified_vit_forward.7} parent=1 // pred_region
      _
    $region13: #{modified_vit_forward.7} parent=1 // pred_fallthru
      _
    // Predicated region
    $region14: #{modified_vit_forward.7} parent=1 // pred_check
      _
    $region15: #{modified_vit_forward.7} parent=1 // pred_check_branch
      %18 = sbr.rel (0) target = $region17
    $region16: #{modified_vit_forward.7} parent=1 // pred_region
      _
    $region17: #{modified_vit_forward.7} parent=1 // pred_fallthru
      _
    // Predicated region
    $region18: #{modified_vit_forward.7} parent=1 // pred_check
      _
    $region19: #{modified_vit_forward.7} parent=1 // pred_check_branch
      %20 = sbr.rel (0) target = $region21
    $region20: #{modified_vit_forward.7} parent=1 // pred_region
      _
    $region21: #{modified_vit_forward.7} parent=1 // pred_fallthru
      _
    %v22 = vld [vmem:[%s0] sm:$0x3]
    %v23 = vld [vmem:[%s1] sm:$0x1]
    %v24 = vld [vmem:[%s2] sm:$0x1]
    %vm25 = vcmask 254976
    %v26 = vsel %vm25, %v22, 0.0
    %27 = vadd.xlane.f32.xlu0 %v26
    %v28 = vpop.xlane.xlu0 %27
    %v29 = vrcp.pop 32.0
    %v30 = vmul.f32 %v28, %v29
    %v31 = vsub.f32 %v22, %v30
    %v32 = vmul.f32 %v31, %v31
    %v33 = vsel %vm25, %v32, 0.0
    %34 = vadd.xlane.f32.xlu0 %v33
    %v35 = vpop.xlane.xlu0 %34
    %v36 = vmul.f32 %v35, %v29
    %v37 = vadd.f32 %v36, 1e-06
    %v38 = vrsqrt.pop %v37
    %v39 = vmul.f32 %v31, %v38
    %v41 = vlaneseq
    %v42 = vshrl.u32 %v41, 7
    %v43 = vsub.s32 0, %v42
    %v44 = vrot.slane %v23, %v43
    %v46 = vmul.f32 %v39, %v44
    %v48 = vlaneseq
    %v49 = vshrl.u32 %v48, 7
    %v50 = vsub.s32 0, %v49
    %v51 = vrot.slane %v24, %v50
    %v53 = vadd.f32 %v46, %v51
    %v54 = vpack.c.bf16 %v53, %v53
    %v55 = vld [vmem:[%s3] sm:$0xf]
    %v56 = vld [vmem:[%s3 + $0x4] sm:$0xf]
    %v57 = vld [vmem:[%s3 + $0x8] sm:$0xf]
    %v58 = vld [vmem:[%s3 + $0xc] sm:$0xf]
    %v59 = vld [vmem:[%s4] sm:$0x1]
    %v61 = vlaneseq
    %v62 = vshrl.u32 %v61, 7
    %v63 = vsub.s32 0, %v62
    %v64 = vrot.slane %v59, %v63
    %v70 = vunpack.c.l.b16 %v55
    %v71 = vunpack.c.l.b16 %v56
    %v72 = vunpack.c.l.b16 %v57
    %v73 = vunpack.c.l.b16 %v58
    %v74 = vpack.c.b16 %v71, %v70
    %v75 = vpack.c.b16 %v73, %v72
    %vm78 = vcmask 261120
    %v80 = vsel %vm78, %v54, 0
    %82 = vmatprep.subr.bf16.mxu0 0
    %83 = vmatpush1.bf16.msra.mxu0 %v74
    %84 = vmatprep.subr.bf16.mxu0 0
    %85 = vmatpush1.bf16.msra.mxu0 %v75
    %86 = vmatprep.subr.bf16.mxu0 0
    %87 = vmatpush1.bf16.msra.mxu0 0
    %88 = vmatprep.subr.bf16.mxu0 0
    %89 = vmatpush1.bf16.msra.mxu0 0
    %90 = vmatprep.subr.bf16.mxu0 0
    %91 = vmatpush1.bf16.msra.mxu0 0
    %92 = vmatprep.subr.bf16.mxu0 0
    %93 = vmatpush1.bf16.msra.mxu0 0
    %94 = vmatprep.subr.bf16.mxu0 0
    %95 = vmatpush1.bf16.msra.mxu0 0
    %96 = vmatprep.subr.bf16.mxu0 0
    %97 = vmatpush1.bf16.msra.mxu0 0
    %98 = vmatprep.subr.bf16.mxu0 0
    %99 = vmatpush1.bf16.msra.mxu0 0
    %100 = vmatprep.subr.bf16.mxu0 0
    %101 = vmatpush1.bf16.msra.mxu0 0
    %102 = vmatprep.subr.bf16.mxu0 0
    %103 = vmatpush1.bf16.msra.mxu0 0
    %104 = vmatprep.subr.bf16.mxu0 0
    %105 = vmatpush1.bf16.msra.mxu0 0
    %106 = vmatprep.subr.bf16.mxu0 0
    %107 = vmatpush1.bf16.msra.mxu0 0
    %108 = vmatprep.subr.bf16.mxu0 0
    %109 = vmatpush1.bf16.msra.mxu0 0
    %110 = vmatprep.subr.bf16.mxu0 0
    %111 = vmatpush1.bf16.msra.mxu0 0
    %112 = vmatprep.subr.bf16.mxu0 0
    %113 = vmatpush1.bf16.msra.mxu0 0
    %114 = vmatprep.mubr.bf16.mxu0 0
    %115 = vmatmul.mubr.bf16.gmra.mrb[0].mxu0 %v80
    %v116 = vpop.f32.mrb[0].mxu0
    %v117 = vadd.f32 %v64, %v116
    %v118 = vpop.f32.mrb[0].mxu0
    %v119 = vpop.f32.mrb[0].mxu0
    %v120 = vpop.f32.mrb[0].mxu0
    %121 = vdwg.mxu0
    %vm122 = vcmask 74752
    %123 = vst.msk [vmem:[#allocation2] sm:$0x3] %vm122, %v117
    // Predicated region
    $region22: #{modified_vit_forward.7} parent=1 // pred_check
      _
    $region23: #{modified_vit_forward.7} parent=1 // pred_check_branch
      %125 = sbr.rel (0) target = $region25
    $region24: #{modified_vit_forward.7} parent=1 // pred_region
      %s127 = ssub.s32 32, 32
      %128 = vsyncadd [#allocation3], %s127
      %s130 = sshll.u32 [#allocation2], 4
      %s131 = int_to_ptr.vmem [resolvable:$true] %s130
      %133 = dma.vmem_to_hbm [thread:$0]  %s131, 32, %s5, [#allocation3]
    $region25: #{modified_vit_forward.7} parent=1 // pred_fallthru
      _
    // Predicated region
    $region26: #{modified_vit_forward.7} parent=1 // pred_check
      _
    $region27: #{modified_vit_forward.7} parent=1 // pred_check_branch
      %135 = sbr.rel (0) target = $region29
    $region28: #{modified_vit_forward.7} parent=1 // pred_region
      %136 = dma.done [#allocation3], 32
    $region29: #{modified_vit_forward.7} parent=1 // pred_fallthru
      _
    %137 = vsyncpa [#allocation3], 1

// kernel: modified_vit_forward.5
$region0: #{modified_vit_forward.5}
  #allocation0 [shape = 'u32[]', space=smem, size = 0x4, offset = 0x4, fixed_abs, tag = 'smem constant byte address 0x4 - core index']
  #allocation1 [shape = 'u32[144,128]{1,0:T(1,128)}', space=vmem, size = 0x12000, scoped, tag = 'internal scratch']
  #allocation2 [shape = 'bf16[17,96]{1,0:T(8,128)(2,1)}', space=vmem, size = 0x1800, scoped, tag = 'scratch operand']
  #allocation3 [shape = 'f32[17,32]{1,0:T(8,128)}', space=vmem, size = 0x3000, scoped, tag = 'scratch operand']
  #allocation4 [shape = 'f32[17,32]{1,0:T(8,128)}', space=vmem, size = 0x3000, scoped, tag = 'scratch operand']
  %s0 = inlined_call_operand.vmem [shape: f32[2,17,32], index: 0, kind: input, shape index: {}]
  %s1 = inlined_call_operand.vmem [shape: f32[1,32], index: 1, kind: input, shape index: {}]
  %s2 = inlined_call_operand.vmem [shape: f32[1,32], index: 2, kind: input, shape index: {}]
  %s3 = inlined_call_operand.vmem [shape: bf16[32,96], index: 3, kind: input, shape index: {}]
  %s4 = inlined_call_operand.vmem [shape: f32[1,96], index: 4, kind: input, shape index: {}]
  %s5 = inlined_call_operand.vmem [shape: bf16[32,32], index: 5, kind: input, shape index: {}]
  %s6 = inlined_call_operand.vmem [shape: f32[1,32], index: 6, kind: input, shape index: {}]
  %s7 = inlined_call_operand.vmem [shape: f32[1,32], index: 7, kind: input, shape index: {}]
  %s8 = inlined_call_operand.vmem [shape: f32[1,32], index: 8, kind: input, shape index: {}]
  %s9 = inlined_call_operand.vmem [shape: bf16[32,128], index: 9, kind: input, shape index: {}]
  %s10 = inlined_call_operand.vmem [shape: f32[1,128], index: 10, kind: input, shape index: {}]
  %s11 = inlined_call_operand.vmem [shape: bf16[128,32], index: 11, kind: input, shape index: {}]
  %s12 = inlined_call_operand.vmem [shape: f32[1,32], index: 12, kind: input, shape index: {}]
  %s13 = inlined_call_operand.vmem [shape: f32[2,17,32], index: 13, kind: output, shape index: {}]
  %s14 = sld [smem:[#allocation0]]
  $region85: #{modified_vit_forward.5} parent=0
    _
  %s16 = ssub.s32 1, %s14
  %s17 = scalar_select 0, %s16, %s14
  loop: start=0, step=1, limit=4
  $region2: #{modified_vit_forward.5} parent=0 // loop_pre_header
    _
  $region3: #{modified_vit_forward.5} parent=0 // loop_header
    %s19 = sphi 0, %s23
    %p20 = scmp.ge.s32.totalorder %s19, 4
    %s29 = sphi 0, %s31
    %s32 = sphi 0, %s29
    %s33 = sphi 0, %s32
    %s49 = sphi 0, %s33
    %s53 = sphi 0, %s53
    %s55 = sphi 0, %s53
    %s56 = sphi 0, %s55
    %s70 = sphi 0, %s56
    %s74 = sphi 0, %s74
    %s76 = sphi 0, %s74
    %s77 = sphi 0, %s76
    %s91 = sphi 0, %s77
    %s95 = sphi 0, %s95
    %s97 = sphi 0, %s95
    %s98 = sphi 0, %s97
    %s112 = sphi 0, %s98
    %s116 = sphi 0, %s116
    %s118 = sphi 0, %s116
    %s119 = sphi 0, %s118
    %s133 = sphi 0, %s119
    %s137 = sphi 0, %s137
    %s139 = sphi 0, %s137
    %s140 = sphi 0, %s139
    %s154 = sphi 0, %s140
    %s158 = sphi 0, %s158
    %s160 = sphi 0, %s158
    %s161 = sphi 0, %s160
    %s175 = sphi 0, %s161
    %s179 = sphi 0, %s179
    %s181 = sphi 0, %s179
    %s182 = sphi 0, %s181
    %s196 = sphi 0, %s182
    %s200 = sphi 0, %s200
    %s202 = sphi 0, %s200
    %s203 = sphi 0, %s202
    %s217 = sphi 0, %s203
    %s221 = sphi 0, %s221
    %s223 = sphi 0, %s221
    %s224 = sphi 0, %s223
    %s238 = sphi 0, %s224
    %s242 = sphi 0, %s242
    %s244 = sphi 0, %s242
    %s245 = sphi 0, %s244
    %s259 = sphi 0, %s245
    %s263 = sphi 0, %s263
    %s265 = sphi 0, %s263
    %s266 = sphi 0, %s265
    %s280 = sphi 0, %s266
    %s284 = sphi 0, %s284
    %s286 = sphi 0, %s284
    %s287 = sphi 0, %s286
    %s301 = sphi 0, %s287
    %s307 = sphi 0, %s309
    %s310 = sphi 0, %s307
    %s311 = sphi 0, %s310
    %s327 = sphi 0, %s311
  $region4: #{modified_vit_forward.5} parent=0 // loop_header_branch
    %22 = sbr.rel (%p20) target = $region8
  $region5: #{modified_vit_forward.5} parent=0 // loop_body
    %s24 = ssub.s32 %s19, 1
    %s25 = ssub.s32 %s19, 2
    %s26 = sadd.s32 %s19, 1
    %s27 = ssub.s32 %s19, %s26
    %p28 = scmp.eq.s32.totalorder %s27, 0
    %s30 = sadd.s32 %s29, 1
    %s31 = scalar_select %p28, %s29, %s30
    %p34 = pneg %p28
    %p35 = scmp.eq.s32.totalorder %s19, 1
    %p36 = por %p34, %p35
    %p37 = scmp.ne.s32.totalorder %s29, %s32
    %p38 = scmp.eq.s32.totalorder %s19, 0
    %p39 = por %p37, %p38
    %p40 = scmp.ne.s32.totalorder %s29, %s32
    %p41 = scmp.eq.s32.totalorder %s24, 1
    %p42 = por %p40, %p41
    %p43 = scmp.ne.s32.totalorder %s32, %s33
    %p44 = scmp.eq.s32.totalorder %s24, 0
    %p45 = por %p43, %p44
    %p46 = scmp.ne.s32.totalorder %s32, %s33
    %p47 = scmp.eq.s32.totalorder %s25, 1
    %p48 = por %p46, %p47
    %p50 = scmp.ne.s32.totalorder %s33, %s49
    %p51 = scmp.eq.s32.totalorder %s25, 0
    %p52 = por %p50, %p51
    %s54 = sadd.s32 %s53, 1
    %p57 = scmp.eq.s32.totalorder %s19, 1
    %p58 = scmp.ne.s32.totalorder %s53, %s55
    %p59 = scmp.eq.s32.totalorder %s19, 0
    %p60 = por %p58, %p59
    %p61 = scmp.ne.s32.totalorder %s53, %s55
    %p62 = scmp.eq.s32.totalorder %s24, 1
    %p63 = por %p61, %p62
    %p64 = scmp.ne.s32.totalorder %s55, %s56
    %p65 = scmp.eq.s32.totalorder %s24, 0
    %p66 = por %p64, %p65
    %p67 = scmp.ne.s32.totalorder %s55, %s56
    %p68 = scmp.eq.s32.totalorder %s25, 1
    %p69 = por %p67, %p68
    %p71 = scmp.ne.s32.totalorder %s56, %s70
    %p72 = scmp.eq.s32.totalorder %s25, 0
    %p73 = por %p71, %p72
    %s75 = sadd.s32 %s74, 1
    %p78 = scmp.eq.s32.totalorder %s19, 1
    %p79 = scmp.ne.s32.totalorder %s74, %s76
    %p80 = scmp.eq.s32.totalorder %s19, 0
    %p81 = por %p79, %p80
    %p82 = scmp.ne.s32.totalorder %s74, %s76
    %p83 = scmp.eq.s32.totalorder %s24, 1
    %p84 = por %p82, %p83
    %p85 = scmp.ne.s32.totalorder %s76, %s77
    %p86 = scmp.eq.s32.totalorder %s24, 0
    %p87 = por %p85, %p86
    %p88 = scmp.ne.s32.totalorder %s76, %s77
    %p89 = scmp.eq.s32.totalorder %s25, 1
    %p90 = por %p88, %p89
    %p92 = scmp.ne.s32.totalorder %s77, %s91
    %p93 = scmp.eq.s32.totalorder %s25, 0
    %p94 = por %p92, %p93
    %s96 = sadd.s32 %s95, 1
    %p99 = scmp.eq.s32.totalorder %s19, 1
    %p100 = scmp.ne.s32.totalorder %s95, %s97
    %p101 = scmp.eq.s32.totalorder %s19, 0
    %p102 = por %p100, %p101
    %p103 = scmp.ne.s32.totalorder %s95, %s97
    %p104 = scmp.eq.s32.totalorder %s24, 1
    %p105 = por %p103, %p104
    %p106 = scmp.ne.s32.totalorder %s97, %s98
    %p107 = scmp.eq.s32.totalorder %s24, 0
    %p108 = por %p106, %p107
    %p109 = scmp.ne.s32.totalorder %s97, %s98
    %p110 = scmp.eq.s32.totalorder %s25, 1
    %p111 = por %p109, %p110
    %p113 = scmp.ne.s32.totalorder %s98, %s112
    %p114 = scmp.eq.s32.totalorder %s25, 0
    %p115 = por %p113, %p114
    %s117 = sadd.s32 %s116, 1
    %p120 = scmp.eq.s32.totalorder %s19, 1
    %p121 = scmp.ne.s32.totalorder %s116, %s118
    %p122 = scmp.eq.s32.totalorder %s19, 0
    %p123 = por %p121, %p122
    %p124 = scmp.ne.s32.totalorder %s116, %s118
    %p125 = scmp.eq.s32.totalorder %s24, 1
    %p126 = por %p124, %p125
    %p127 = scmp.ne.s32.totalorder %s118, %s119
    %p128 = scmp.eq.s32.totalorder %s24, 0
    %p129 = por %p127, %p128
    %p130 = scmp.ne.s32.totalorder %s118, %s119
    %p131 = scmp.eq.s32.totalorder %s25, 1
    %p132 = por %p130, %p131
    %p134 = scmp.ne.s32.totalorder %s119, %s133
    %p135 = scmp.eq.s32.totalorder %s25, 0
    %p136 = por %p134, %p135
    %s138 = sadd.s32 %s137, 1
    %p141 = scmp.eq.s32.totalorder %s19, 1
    %p142 = scmp.ne.s32.totalorder %s137, %s139
    %p143 = scmp.eq.s32.totalorder %s19, 0
    %p144 = por %p142, %p143
    %p145 = scmp.ne.s32.totalorder %s137, %s139
    %p146 = scmp.eq.s32.totalorder %s24, 1
    %p147 = por %p145, %p146
    %p148 = scmp.ne.s32.totalorder %s139, %s140
    %p149 = scmp.eq.s32.totalorder %s24, 0
    %p150 = por %p148, %p149
    %p151 = scmp.ne.s32.totalorder %s139, %s140
    %p152 = scmp.eq.s32.totalorder %s25, 1
    %p153 = por %p151, %p152
    %p155 = scmp.ne.s32.totalorder %s140, %s154
    %p156 = scmp.eq.s32.totalorder %s25, 0
    %p157 = por %p155, %p156
    %s159 = sadd.s32 %s158, 1
    %p162 = scmp.eq.s32.totalorder %s19, 1
    %p163 = scmp.ne.s32.totalorder %s158, %s160
    %p164 = scmp.eq.s32.totalorder %s19, 0
    %p165 = por %p163, %p164
    %p166 = scmp.ne.s32.totalorder %s158, %s160
    %p167 = scmp.eq.s32.totalorder %s24, 1
    %p168 = por %p166, %p167
    %p169 = scmp.ne.s32.totalorder %s160, %s161
    %p170 = scmp.eq.s32.totalorder %s24, 0
    %p171 = por %p169, %p170
    %p172 = scmp.ne.s32.totalorder %s160, %s161
    %p173 = scmp.eq.s32.totalorder %s25, 1
    %p174 = por %p172, %p173
    %p176 = scmp.ne.s32.totalorder %s161, %s175
    %p177 = scmp.eq.s32.totalorder %s25, 0
    %p178 = por %p176, %p177
    %s180 = sadd.s32 %s179, 1
    %p183 = scmp.eq.s32.totalorder %s19, 1
    %p184 = scmp.ne.s32.totalorder %s179, %s181
    %p185 = scmp.eq.s32.totalorder %s19, 0
    %p186 = por %p184, %p185
    %p187 = scmp.ne.s32.totalorder %s179, %s181
    %p188 = scmp.eq.s32.totalorder %s24, 1
    %p189 = por %p187, %p188
    %p190 = scmp.ne.s32.totalorder %s181, %s182
    %p191 = scmp.eq.s32.totalorder %s24, 0
    %p192 = por %p190, %p191
    %p193 = scmp.ne.s32.totalorder %s181, %s182
    %p194 = scmp.eq.s32.totalorder %s25, 1
    %p195 = por %p193, %p194
    %p197 = scmp.ne.s32.totalorder %s182, %s196
    %p198 = scmp.eq.s32.totalorder %s25, 0
    %p199 = por %p197, %p198
    %s201 = sadd.s32 %s200, 1
    %p204 = scmp.eq.s32.totalorder %s19, 1
    %p205 = scmp.ne.s32.totalorder %s200, %s202
    %p206 = scmp.eq.s32.totalorder %s19, 0
    %p207 = por %p205, %p206
    %p208 = scmp.ne.s32.totalorder %s200, %s202
    %p209 = scmp.eq.s32.totalorder %s24, 1
    %p210 = por %p208, %p209
    %p211 = scmp.ne.s32.totalorder %s202, %s203
    %p212 = scmp.eq.s32.totalorder %s24, 0
    %p213 = por %p211, %p212
    %p214 = scmp.ne.s32.totalorder %s202, %s203
    %p215 = scmp.eq.s32.totalorder %s25, 1
    %p216 = por %p214, %p215
    %p218 = scmp.ne.s32.totalorder %s203, %s217
    %p219 = scmp.eq.s32.totalorder %s25, 0
    %p220 = por %p218, %p219
    %s222 = sadd.s32 %s221, 1
    %p225 = scmp.eq.s32.totalorder %s19, 1
    %p226 = scmp.ne.s32.totalorder %s221, %s223
    %p227 = scmp.eq.s32.totalorder %s19, 0
    %p228 = por %p226, %p227
    %p229 = scmp.ne.s32.totalorder %s221, %s223
    %p230 = scmp.eq.s32.totalorder %s24, 1
    %p231 = por %p229, %p230
    %p232 = scmp.ne.s32.totalorder %s223, %s224
    %p233 = scmp.eq.s32.totalorder %s24, 0
    %p234 = por %p232, %p233
    %p235 = scmp.ne.s32.totalorder %s223, %s224
    %p236 = scmp.eq.s32.totalorder %s25, 1
    %p237 = por %p235, %p236
    %p239 = scmp.ne.s32.totalorder %s224, %s238
    %p240 = scmp.eq.s32.totalorder %s25, 0
    %p241 = por %p239, %p240
    %s243 = sadd.s32 %s242, 1
    %p246 = scmp.eq.s32.totalorder %s19, 1
    %p247 = scmp.ne.s32.totalorder %s242, %s244
    %p248 = scmp.eq.s32.totalorder %s19, 0
    %p249 = por %p247, %p248
    %p250 = scmp.ne.s32.totalorder %s242, %s244
    %p251 = scmp.eq.s32.totalorder %s24, 1
    %p252 = por %p250, %p251
    %p253 = scmp.ne.s32.totalorder %s244, %s245
    %p254 = scmp.eq.s32.totalorder %s24, 0
    %p255 = por %p253, %p254
    %p256 = scmp.ne.s32.totalorder %s244, %s245
    %p257 = scmp.eq.s32.totalorder %s25, 1
    %p258 = por %p256, %p257
    %p260 = scmp.ne.s32.totalorder %s245, %s259
    %p261 = scmp.eq.s32.totalorder %s25, 0
    %p262 = por %p260, %p261
    %s264 = sadd.s32 %s263, 1
    %p267 = scmp.eq.s32.totalorder %s19, 1
    %p268 = scmp.ne.s32.totalorder %s263, %s265
    %p269 = scmp.eq.s32.totalorder %s19, 0
    %p270 = por %p268, %p269
    %p271 = scmp.ne.s32.totalorder %s263, %s265
    %p272 = scmp.eq.s32.totalorder %s24, 1
    %p273 = por %p271, %p272
    %p274 = scmp.ne.s32.totalorder %s265, %s266
    %p275 = scmp.eq.s32.totalorder %s24, 0
    %p276 = por %p274, %p275
    %p277 = scmp.ne.s32.totalorder %s265, %s266
    %p278 = scmp.eq.s32.totalorder %s25, 1
    %p279 = por %p277, %p278
    %p281 = scmp.ne.s32.totalorder %s266, %s280
    %p282 = scmp.eq.s32.totalorder %s25, 0
    %p283 = por %p281, %p282
    %s285 = sadd.s32 %s284, 1
    %p288 = scmp.eq.s32.totalorder %s19, 1
    %p289 = scmp.ne.s32.totalorder %s284, %s286
    %p290 = scmp.eq.s32.totalorder %s19, 0
    %p291 = por %p289, %p290
    %p292 = scmp.ne.s32.totalorder %s284, %s286
    %p293 = scmp.eq.s32.totalorder %s24, 1
    %p294 = por %p292, %p293
    %p295 = scmp.ne.s32.totalorder %s286, %s287
    %p296 = scmp.eq.s32.totalorder %s24, 0
    %p297 = por %p295, %p296
    %p298 = scmp.ne.s32.totalorder %s286, %s287
    %p299 = scmp.eq.s32.totalorder %s25, 1
    %p300 = por %p298, %p299
    %p302 = scmp.ne.s32.totalorder %s287, %s301
    %p303 = scmp.eq.s32.totalorder %s25, 0
    %p304 = por %p302, %p303
    %s305 = ssub.s32 %s19, %s26
    %p306 = scmp.eq.s32.totalorder %s305, 0
    %s308 = sadd.s32 %s307, 1
    %s309 = scalar_select %p306, %s307, %s308
    %p312 = pneg %p306
    %p313 = scmp.eq.s32.totalorder %s19, 1
    %p314 = por %p312, %p313
    %p315 = scmp.ne.s32.totalorder %s307, %s310
    %p316 = scmp.eq.s32.totalorder %s19, 0
    %p317 = por %p315, %p316
    %p318 = scmp.ne.s32.totalorder %s307, %s310
    %p319 = scmp.eq.s32.totalorder %s24, 1
    %p320 = por %p318, %p319
    %p321 = scmp.ne.s32.totalorder %s310, %s311
    %p322 = scmp.eq.s32.totalorder %s24, 0
    %p323 = por %p321, %p322
    %p324 = scmp.ne.s32.totalorder %s310, %s311
    %p325 = scmp.eq.s32.totalorder %s25, 1
    %p326 = por %p324, %p325
    %p328 = scmp.ne.s32.totalorder %s311, %s327
    %p329 = scmp.eq.s32.totalorder %s25, 0
    %p330 = por %p328, %p329
    %p331 = scmp.le.s32.totalorder 1, %s19
    %p332 = scmp.lt.s32.totalorder %s19, 3
    %p333 = pnand %p331, %p332
    %p334 = pneg %p333
    // Predicated region
    $region9: #{modified_vit_forward.5} parent=5 // pred_check
      _
    $region10: #{modified_vit_forward.5} parent=5 // pred_check_branch
      %336 = sbr.rel (%p333) target = $region12
    $region11: #{modified_vit_forward.5} parent=5 // pred_region
      %s337 = ssub.s32 %s19, 1
      // Predicated region
      $region13: #{modified_vit_forward.5} parent=11 // pred_check
        %p338 = pneg %p66
      $region14: #{modified_vit_forward.5} parent=11 // pred_check_branch
        %340 = sbr.rel (%p338) target = $region16
      $region15: #{modified_vit_forward.5} parent=11 // pred_region
        _
      $region16: #{modified_vit_forward.5} parent=11 // pred_fallthru
        _
      // Predicated region
      $region17: #{modified_vit_forward.5} parent=11 // pred_check
        %p341 = pneg %p87
      $region18: #{modified_vit_forward.5} parent=11 // pred_check_branch
        %343 = sbr.rel (%p341) target = $region20
      $region19: #{modified_vit_forward.5} parent=11 // pred_region
        _
      $region20: #{modified_vit_forward.5} parent=11 // pred_fallthru
        _
      // Predicated region
      $region21: #{modified_vit_forward.5} parent=11 // pred_check
        %p344 = pneg %p108
      $region22: #{modified_vit_forward.5} parent=11 // pred_check_branch
        %346 = sbr.rel (%p344) target = $region24
      $region23: #{modified_vit_forward.5} parent=11 // pred_region
        _
      $region24: #{modified_vit_forward.5} parent=11 // pred_fallthru
        _
      // Predicated region
      $region25: #{modified_vit_forward.5} parent=11 // pred_check
        %p347 = pneg %p129
      $region26: #{modified_vit_forward.5} parent=11 // pred_check_branch
        %349 = sbr.rel (%p347) target = $region28
      $region27: #{modified_vit_forward.5} parent=11 // pred_region
        _
      $region28: #{modified_vit_forward.5} parent=11 // pred_fallthru
        _
      // Predicated region
      $region29: #{modified_vit_forward.5} parent=11 // pred_check
        %p350 = pneg %p150
      $region30: #{modified_vit_forward.5} parent=11 // pred_check_branch
        %352 = sbr.rel (%p350) target = $region32
      $region31: #{modified_vit_forward.5} parent=11 // pred_region
        _
      $region32: #{modified_vit_forward.5} parent=11 // pred_fallthru
        _
      // Predicated region
      $region33: #{modified_vit_forward.5} parent=11 // pred_check
        %p353 = pneg %p171
      $region34: #{modified_vit_forward.5} parent=11 // pred_check_branch
        %355 = sbr.rel (%p353) target = $region36
      $region35: #{modified_vit_forward.5} parent=11 // pred_region
        _
      $region36: #{modified_vit_forward.5} parent=11 // pred_fallthru
        _
      // Predicated region
      $region37: #{modified_vit_forward.5} parent=11 // pred_check
        %p356 = pneg %p192
      $region38: #{modified_vit_forward.5} parent=11 // pred_check_branch
        %358 = sbr.rel (%p356) target = $region40
      $region39: #{modified_vit_forward.5} parent=11 // pred_region
        _
      $region40: #{modified_vit_forward.5} parent=11 // pred_fallthru
        _
      // Predicated region
      $region41: #{modified_vit_forward.5} parent=11 // pred_check
        %p359 = pneg %p213
      $region42: #{modified_vit_forward.5} parent=11 // pred_check_branch
        %361 = sbr.rel (%p359) target = $region44
      $region43: #{modified_vit_forward.5} parent=11 // pred_region
        _
      $region44: #{modified_vit_forward.5} parent=11 // pred_fallthru
        _
      // Predicated region
      $region45: #{modified_vit_forward.5} parent=11 // pred_check
        %p362 = pneg %p234
      $region46: #{modified_vit_forward.5} parent=11 // pred_check_branch
        %364 = sbr.rel (%p362) target = $region48
      $region47: #{modified_vit_forward.5} parent=11 // pred_region
        _
      $region48: #{modified_vit_forward.5} parent=11 // pred_fallthru
        _
      // Predicated region
      $region49: #{modified_vit_forward.5} parent=11 // pred_check
        %p365 = pneg %p255
      $region50: #{modified_vit_forward.5} parent=11 // pred_check_branch
        %367 = sbr.rel (%p365) target = $region52
      $region51: #{modified_vit_forward.5} parent=11 // pred_region
        _
      $region52: #{modified_vit_forward.5} parent=11 // pred_fallthru
        _
      // Predicated region
      $region53: #{modified_vit_forward.5} parent=11 // pred_check
        %p368 = pneg %p276
      $region54: #{modified_vit_forward.5} parent=11 // pred_check_branch
        %370 = sbr.rel (%p368) target = $region56
      $region55: #{modified_vit_forward.5} parent=11 // pred_region
        _
      $region56: #{modified_vit_forward.5} parent=11 // pred_fallthru
        _
      // Predicated region
      $region57: #{modified_vit_forward.5} parent=11 // pred_check
        %p371 = pneg %p297
      $region58: #{modified_vit_forward.5} parent=11 // pred_check_branch
        %373 = sbr.rel (%p371) target = $region60
      $region59: #{modified_vit_forward.5} parent=11 // pred_region
        _
      $region60: #{modified_vit_forward.5} parent=11 // pred_fallthru
        _
    $region12: #{modified_vit_forward.5} parent=5 // pred_fallthru
      _
    %p374 = scmp.lt.s32.totalorder %s19, 2
    // Predicated region
    $region61: #{modified_vit_forward.5} parent=5 // pred_check
      %p375 = pneg %p374
    $region62: #{modified_vit_forward.5} parent=5 // pred_check_branch
      %377 = sbr.rel (%p375) target = $region64
    $region63: #{modified_vit_forward.5} parent=5 // pred_region
      // Predicated region
      $region65: #{modified_vit_forward.5} parent=63 // pred_check
        %p378 = pneg %p39
      $region66: #{modified_vit_forward.5} parent=63 // pred_check_branch
        %380 = sbr.rel (%p378) target = $region68
      $region67: #{modified_vit_forward.5} parent=63 // pred_region
        %p381 = scmp.lt.s32.totalorder %s19, 1
        %s382 = scalar_select %p381, %s19, 1
        %s383 = smul.addr %s382, 3
        %s384 = smul.addr %s383, 8
        %s385 = scalar_lea.vmem %s0, %s384
      $region68: #{modified_vit_forward.5} parent=63 // pred_fallthru
        _
    $region64: #{modified_vit_forward.5} parent=5 // pred_fallthru
      _
    %p386 = scmp.le.s32.totalorder 1, %s19
    %p387 = scmp.lt.s32.totalorder %s19, 3
    %p388 = pnand %p386, %p387
    %p389 = pneg %p388
    // Predicated region
    $region69: #{modified_vit_forward.5} parent=5 // pred_check
      _
    $region70: #{modified_vit_forward.5} parent=5 // pred_check_branch
      %391 = sbr.rel (%p388) target = $region72
    $region71: #{modified_vit_forward.5} parent=5 // pred_region
      %s392 = ssub.s32 %s19, 1
      %p393 = scmp.lt.s32.totalorder %s24, 1
      %s394 = scalar_select %p393, %s24, 1
      %s395 = smul.addr %s394, 3
      %s396 = smul.addr %s395, 8
      %s397 = scalar_lea.vmem %s0, %s396
      %p398 = pneg %p45
      %p399 = pneg %p42
      %p400 = pneg %p66
      %p401 = pneg %p63
      %p402 = pneg %p87
      %p403 = pneg %p84
      %p404 = pneg %p108
      %p405 = pneg %p105
      %p406 = pneg %p129
      %p407 = pneg %p126
      %p408 = pneg %p150
      %p409 = pneg %p147
      %p410 = pneg %p171
      %p411 = pneg %p168
      %p412 = pneg %p192
      %p413 = pneg %p189
      %p414 = pneg %p213
      %p415 = pneg %p210
      %p416 = pneg %p234
      %p417 = pneg %p231
      %p418 = pneg %p255
      %p419 = pneg %p252
      %p420 = pneg %p276
      %p421 = pneg %p273
      %p422 = pneg %p297
      %p423 = pneg %p294
      %p424 = pneg %p323
      %p425 = pneg %p320
      %p426 = scmp.lt.s32.totalorder %s24, 1
      %s427 = scalar_select %p426, %s24, 1
      %s428 = smul.addr %s427, 3
      %s429 = smul.addr %s428, 8
      %s430 = scalar_lea.vmem %s13, %s429
      %p431 = scmp.lt.s32.totalorder %s24, 1
      %s432 = scalar_select %p431, %s24, 1
      %s433 = smul.addr %s432, 3
      %s434 = smul.addr %s433, 8
      %s435 = scalar_lea.vmem %s0, %s434
      %p436 = scmp.lt.s32.totalorder %s24, 1
      %s437 = scalar_select %p436, %s24, 1
      %s438 = smul.addr %s437, 3
      %s439 = smul.addr %s438, 8
      %s440 = scalar_lea.vmem %s13, %s439
      %v442 = vld [vmem:[%s435] sm:$0xff]
      %v443 = vld [vmem:[%s435 + $0x8] sm:$0xff]
      %v444 = vld [vmem:[%s435 + $0x10] sm:$0x1]
      %v445 = vld [vmem:[%s1] sm:$0x1]
      %v446 = vld [vmem:[%s2] sm:$0x1]
      %vm447 = vcmask 261120
      %v448 = vsel %vm447, %v442, 0.0
      %449 = vadd.xlane.f32.xlu0 %v448
      %v450 = vpop.xlane.xlu0 %449
      %v451 = vsel %vm447, %v443, 0.0
      %452 = vadd.xlane.f32.xlu0 %v451
      %v453 = vpop.xlane.xlu0 %452
      %vm454 = vcmask 253952
      %v455 = vsel %vm454, %v444, 0.0
      %456 = vadd.xlane.f32.xlu0 %v455
      %v457 = vpop.xlane.xlu0 %456
      %v458 = vrcp.pop 32.0
      %v459 = vmul.f32 %v450, %v458
      %v460 = vmul.f32 %v453, %v458
      %v461 = vmul.f32 %v457, %v458
      %v462 = vsub.f32 %v442, %v459
      %v463 = vsub.f32 %v443, %v460
      %v464 = vsub.f32 %v444, %v461
      %v465 = vmul.f32 %v462, %v462
      %v466 = vmul.f32 %v463, %v463
      %v467 = vmul.f32 %v464, %v464
      %v468 = vsel %vm447, %v465, 0.0
      %469 = vadd.xlane.f32.xlu0 %v468
      %v470 = vpop.xlane.xlu0 %469
      %v471 = vsel %vm447, %v466, 0.0
      %472 = vadd.xlane.f32.xlu0 %v471
      %v473 = vpop.xlane.xlu0 %472
      %v474 = vsel %vm454, %v467, 0.0
      %475 = vadd.xlane.f32.xlu0 %v474
      %v476 = vpop.xlane.xlu0 %475
      %v477 = vmul.f32 %v470, %v458
      %v478 = vmul.f32 %v473, %v458
      %v479 = vmul.f32 %v476, %v458
      %v480 = vadd.f32 %v477, 1e-06
      %v481 = vadd.f32 %v478, 1e-06
      %v482 = vadd.f32 %v479, 1e-06
      %v483 = vrsqrt.pop %v480
      %v484 = vrsqrt.pop %v481
      %v485 = vrsqrt.pop %v482
      %v486 = vmul.f32 %v462, %v483
      %v487 = vmul.f32 %v463, %v484
      %v488 = vmul.f32 %v464, %v485
      %v490 = vlaneseq
      %v491 = vshrl.u32 %v490, 7
      %v492 = vsub.s32 0, %v491
      %v493 = vrot.slane %v445, %v492
      %v495 = vmul.f32 %v486, %v493
      %v496 = vmul.f32 %v487, %v493
      %v497 = vmul.f32 %v488, %v493
      %v499 = vlaneseq
      %v500 = vshrl.u32 %v499, 7
      %v501 = vsub.s32 0, %v500
      %v502 = vrot.slane %v446, %v501
      %v504 = vadd.f32 %v495, %v502
      %v505 = vadd.f32 %v496, %v502
      %v506 = vadd.f32 %v497, %v502
      %v507 = vpack.c.bf16 %v505, %v504
      %v508 = vpack.c.bf16 %v506, %v506
      %v509 = vld [vmem:[%s3] sm:$0xf]
      %v510 = vld [vmem:[%s3 + $0x4] sm:$0xf]
      %v511 = vld [vmem:[%s3 + $0x8] sm:$0xf]
      %v512 = vld [vmem:[%s3 + $0xc] sm:$0xf]
      %v513 = vld [vmem:[%s4] sm:$0x1]
      %v515 = vlaneseq
      %v516 = vshrl.u32 %v515, 7
      %v517 = vsub.s32 0, %v516
      %v518 = vrot.slane %v513, %v517
      %v524 = vunpack.c.l.b16 %v509
      %v525 = vunpack.c.l.b16 %v510
      %v526 = vunpack.c.l.b16 %v511
      %v527 = vunpack.c.l.b16 %v512
      %v528 = vpack.c.b16 %v525, %v524
      %v529 = vpack.c.b16 %v527, %v526
      %v533 = vsel %vm447, %v507, 0
      %v536 = vsel %vm447, %v508, 0
      %538 = vmatprep.subr.bf16.mxu0 0
      %539 = vmatpush1.bf16.msra.mxu0 %v528
      %540 = vmatprep.subr.bf16.mxu0 0
      %541 = vmatpush1.bf16.msra.mxu0 %v529
      %542 = vmatprep.subr.bf16.mxu0 0
      %543 = vmatpush1.bf16.msra.mxu0 0
      %544 = vmatprep.subr.bf16.mxu0 0
      %545 = vmatpush1.bf16.msra.mxu0 0
      %546 = vmatprep.subr.bf16.mxu0 0
      %547 = vmatpush1.bf16.msra.mxu0 0
      %548 = vmatprep.subr.bf16.mxu0 0
      %549 = vmatpush1.bf16.msra.mxu0 0
      %550 = vmatprep.subr.bf16.mxu0 0
      %551 = vmatpush1.bf16.msra.mxu0 0
      %552 = vmatprep.subr.bf16.mxu0 0
      %553 = vmatpush1.bf16.msra.mxu0 0
      %554 = vmatprep.subr.bf16.mxu0 0
      %555 = vmatpush1.bf16.msra.mxu0 0
      %556 = vmatprep.subr.bf16.mxu0 0
      %557 = vmatpush1.bf16.msra.mxu0 0
      %558 = vmatprep.subr.bf16.mxu0 0
      %559 = vmatpush1.bf16.msra.mxu0 0
      %560 = vmatprep.subr.bf16.mxu0 0
      %561 = vmatpush1.bf16.msra.mxu0 0
      %562 = vmatprep.subr.bf16.mxu0 0
      %563 = vmatpush1.bf16.msra.mxu0 0
      %564 = vmatprep.subr.bf16.mxu0 0
      %565 = vmatpush1.bf16.msra.mxu0 0
      %566 = vmatprep.subr.bf16.mxu0 0
      %567 = vmatpush1.bf16.msra.mxu0 0
      %568 = vmatprep.subr.bf16.mxu0 0
      %569 = vmatpush1.bf16.msra.mxu0 0
      %570 = vmatprep.mubr.bf16.mxu0 0
      %571 = vmatmul.mubr.bf16.gmra.mrb[0].mxu0 %v533
      %v572 = vpop.f32.mrb[0].mxu0
      %v573 = vadd.f32 %v518, %v572
      %v574 = vpop.f32.mrb[0].mxu0
      %v575 = vpop.f32.mrb[0].mxu0
      %v576 = vadd.f32 %v518, %v575
      %v577 = vpop.f32.mrb[0].mxu0
      %578 = vmatprep.mubr.bf16.mxu0 0
      %579 = vmatmul.mubr.bf16.gmra.mrb[0].mxu0 %v536
      %v580 = vpop.f32.mrb[0].mxu0
      %v581 = vadd.f32 %v518, %v580
      %v582 = vpop.f32.mrb[0].mxu0
      %v583 = vpop.f32.mrb[0].mxu0
      %v584 = vpop.f32.mrb[0].mxu0
      %585 = vdwg.mxu0
      %v586 = vpack.c.bf16 %v576, %v573
      %v587 = vpack.c.bf16 %v581, %v581
      %v590 = vunpack.c.l.b16 %v586
      %v591 = vunpack.c.h.b16 %v586
      %v592 = vunpack.c.l.b16 %v587
      %v593 = vpack.c.b16 %v590, %v590
      %v594 = vpack.c.b16 %v591, %v591
      %v595 = vpack.c.b16 %v592, %v592
      %vm599 = vcmask 781312
      %600 = vst.msk [vmem:[#allocation2] sm:$0xf] %vm599, %v593
      %601 = vst.msk [vmem:[#allocation2 + $0x4] sm:$0xf] %vm599, %v594
      %vm602 = vcmask 778240
      %vm603 = vsmask.f32 256
      %vm604 = vmand %vm602, %vm603
      %v605 = vld [vmem:[#allocation2 + $0x8] sm:$0x1]
      %v606 = vsel %vm604, %v595, %v605
      %607 = vst [vmem:[#allocation2 + $0x8] sm:$0x1] %v606
      %v608 = vld [vmem:[#allocation2] sm:$0xf]
      %v609 = vld [vmem:[#allocation2 + $0x4] sm:$0xf]
      %v610 = vld [vmem:[#allocation2 + $0x8] sm:$0x1]
      %v614 = vunpack.c.l.b16 %v608
      %v615 = vunpack.c.l.b16 %v609
      %v616 = vunpack.c.l.b16 %v610
      %v617 = vpack.c.b16 %v615, %v614
      %v618 = vpack.c.b16 %v616, %v616
      %619 = vrot.lane.b32.xlu0 %v617, 96
      %v620 = vpop.permute.xlu0 %619
      %621 = vrot.lane.b32.xlu0 %v618, 96
      %v622 = vpop.permute.xlu0 %621
      %vm623 = vcmask 64512
      %v625 = vsel %vm623, %v617, 0
      %v628 = vsel %vm623, %v618, 0
      %v631 = vsel %vm623, %v620, 0
      %v634 = vsel %vm623, %v622, 0
      %636 = vmatprep.subr.bf16.mxu0 0
      %637 = vmatpush1.bf16.xpose.msra.mxu0 %v631
      %638 = vmatprep.subr.bf16.mxu0 0
      %639 = vmatpush1.bf16.xpose.msra.mxu0 %v634
      %640 = vmatprep.subr.bf16.mxu0 0
      %641 = vmatpush1.bf16.xpose.msra.mxu0 0
      %642 = vmatprep.subr.bf16.mxu0 0
      %643 = vmatpush1.bf16.xpose.msra.mxu0 0
      %644 = vmatprep.subr.bf16.mxu0 0
      %645 = vmatpush1.bf16.xpose.msra.mxu0 0
      %646 = vmatprep.subr.bf16.mxu0 0
      %647 = vmatpush1.bf16.xpose.msra.mxu0 0
      %648 = vmatprep.subr.bf16.mxu0 0
      %649 = vmatpush1.bf16.xpose.msra.mxu0 0
      %650 = vmatprep.subr.bf16.mxu0 0
      %651 = vmatpush1.bf16.xpose.msra.mxu0 0
      %652 = vmatprep.subr.bf16.mxu0 0
      %653 = vmatpush1.bf16.xpose.msra.mxu0 0
      %654 = vmatprep.subr.bf16.mxu0 0
      %655 = vmatpush1.bf16.xpose.msra.mxu0 0
      %656 = vmatprep.subr.bf16.mxu0 0
      %657 = vmatpush1.bf16.xpose.msra.mxu0 0
      %658 = vmatprep.subr.bf16.mxu0 0
      %659 = vmatpush1.bf16.xpose.msra.mxu0 0
      %660 = vmatprep.subr.bf16.mxu0 0
      %661 = vmatpush1.bf16.xpose.msra.mxu0 0
      %662 = vmatprep.subr.bf16.mxu0 0
      %663 = vmatpush1.bf16.xpose.msra.mxu0 0
      %664 = vmatprep.subr.bf16.mxu0 0
      %665 = vmatpush1.bf16.xpose.msra.mxu0 0
      %666 = vmatprep.subr.bf16.mxu0 0
      %667 = vmatpush1.bf16.xpose.msra.mxu0 0
      %668 = vmatprep.mubr.bf16.mxu0 0
      %669 = vmatmul.mubr.bf16.gmra.mrb[0].mxu0 %v625
      %v670 = vpop.f32.mrb[0].mxu0
      %v671 = vadd.f32 0.0, %v670
      %v672 = vpop.f32.mrb[0].mxu0
      %v673 = vpop.f32.mrb[0].mxu0
      %v674 = vadd.f32 0.0, %v673
      %v675 = vpop.f32.mrb[0].mxu0
      %676 = vmatprep.mubr.bf16.mxu0 0
      %677 = vmatmul.mubr.bf16.gmra.mrb[0].mxu0 %v628
      %v678 = vpop.f32.mrb[0].mxu0
      %v679 = vadd.f32 0.0, %v678
      %v680 = vpop.f32.mrb[0].mxu0
      %v681 = vpop.f32.mrb[0].mxu0
      %v682 = vpop.f32.mrb[0].mxu0
      %683 = vdwg.mxu0
      %vm684 = vcmask 138240
      %v685 = vsel %vm684, %v671, -inf
      %686 = vmax.xlane.f32.xlu0 %v685
      %v687 = vpop.xlane.xlu0 %686
      %v688 = vsel %vm684, %v674, -inf
      %689 = vmax.xlane.f32.xlu0 %v688
      %v690 = vpop.xlane.xlu0 %689
      %vm691 = vcmask 131072
      %v692 = vsel %vm691, %v679, -inf
      %693 = vmax.xlane.f32.xlu0 %v692
      %v694 = vpop.xlane.xlu0 %693
      %v695 = vsub.f32 %v671, %v687
      %v696 = vsub.f32 %v674, %v690
      %v697 = vsub.f32 %v679, %v694
      %v698 = vmul.f32 %v695, 1.442695
      %v699 = vpow.pop %v698
      %v700 = vmul.f32 %v696, 1.442695
      %v701 = vpow.pop %v700
      %v702 = vmul.f32 %v697, 1.442695
      %v703 = vpow.pop %v702
      %v704 = vsel %vm684, %v699, 0.0
      %705 = vadd.xlane.f32.xlu0 %v704
      %v706 = vpop.xlane.xlu0 %705
      %v707 = vsel %vm684, %v701, 0.0
      %708 = vadd.xlane.f32.xlu0 %v707
      %v709 = vpop.xlane.xlu0 %708
      %v710 = vsel %vm691, %v703, 0.0
      %711 = vadd.xlane.f32.xlu0 %v710
      %v712 = vpop.xlane.xlu0 %711
      %v713 = vrcp.pop %v706
      %v714 = vrcp.pop %v709
      %v715 = vrcp.pop %v712
      %v716 = vmul.f32 %v699, %v713
      %v717 = vmul.f32 %v701, %v714
      %v718 = vmul.f32 %v703, %v715
      %v719 = vpack.c.bf16 %v717, %v716
      %v720 = vpack.c.bf16 %v718, %v718
      %721 = vrot.lane.b32.xlu0 %v617, 64
      %v722 = vpop.permute.xlu0 %721
      %723 = vrot.lane.b32.xlu0 %v618, 64
      %v724 = vpop.permute.xlu0 %723
      %v727 = vsel %vm684, %v719, 0
      %v730 = vsel %vm684, %v720, 0
      %vm732 = vcmask 1040384
      %v733 = vsel 0, 4294967295, 65535
      %v734 = vsel %vm732, %v733, 0
      %v736 = vand.u32 %v724, %v734
      %738 = vmatprep.subr.bf16.mxu0 0
      %739 = vmatpush1.bf16.msra.mxu0 %v722
      %740 = vmatprep.subr.bf16.mxu0 0
      %741 = vmatpush1.bf16.msra.mxu0 %v736
      %742 = vmatprep.subr.bf16.mxu0 0
      %743 = vmatpush1.bf16.msra.mxu0 0
      %744 = vmatprep.subr.bf16.mxu0 0
      %745 = vmatpush1.bf16.msra.mxu0 0
      %746 = vmatprep.subr.bf16.mxu0 0
      %747 = vmatpush1.bf16.msra.mxu0 0
      %748 = vmatprep.subr.bf16.mxu0 0
      %749 = vmatpush1.bf16.msra.mxu0 0
      %750 = vmatprep.subr.bf16.mxu0 0
      %751 = vmatpush1.bf16.msra.mxu0 0
      %752 = vmatprep.subr.bf16.mxu0 0
      %753 = vmatpush1.bf16.msra.mxu0 0
      %754 = vmatprep.subr.bf16.mxu0 0
      %755 = vmatpush1.bf16.msra.mxu0 0
      %756 = vmatprep.subr.bf16.mxu0 0
      %757 = vmatpush1.bf16.msra.mxu0 0
      %758 = vmatprep.subr.bf16.mxu0 0
      %759 = vmatpush1.bf16.msra.mxu0 0
      %760 = vmatprep.subr.bf16.mxu0 0
      %761 = vmatpush1.bf16.msra.mxu0 0
      %762 = vmatprep.subr.bf16.mxu0 0
      %763 = vmatpush1.bf16.msra.mxu0 0
      %764 = vmatprep.subr.bf16.mxu0 0
      %765 = vmatpush1.bf16.msra.mxu0 0
      %766 = vmatprep.subr.bf16.mxu0 0
      %767 = vmatpush1.bf16.msra.mxu0 0
      %768 = vmatprep.subr.bf16.mxu0 0
      %769 = vmatpush1.bf16.msra.mxu0 0
      %770 = vmatprep.mubr.bf16.mxu0 0
      %771 = vmatmul.mubr.bf16.gmra.mrb[0].mxu0 %v727
      %v772 = vpop.f32.mrb[0].mxu0
      %v773 = vadd.f32 0.0, %v772
      %v774 = vpop.f32.mrb[0].mxu0
      %v775 = vpop.f32.mrb[0].mxu0
      %v776 = vadd.f32 0.0, %v775
      %v777 = vpop.f32.mrb[0].mxu0
      %778 = vmatprep.mubr.bf16.mxu0 0
      %779 = vmatmul.mubr.bf16.gmra.mrb[0].mxu0 %v730
      %v780 = vpop.f32.mrb[0].mxu0
      %v781 = vadd.f32 0.0, %v780
      %v782 = vpop.f32.mrb[0].mxu0
      %v783 = vpop.f32.mrb[0].mxu0
      %v784 = vpop.f32.mrb[0].mxu0
      %785 = vdwg.mxu0
      %786 = vst.msk [vmem:[#allocation3] sm:$0xff] %vm623, %v773
      %787 = vst.msk [vmem:[#allocation3 + $0x8] sm:$0xff] %vm623, %v776
      %vm788 = vcmask 57344
      %789 = vst.msk [vmem:[#allocation3 + $0x10] sm:$0x1] %vm788, %v781
      %v790 = vld [vmem:[#allocation2] sm:$0xf]
      %v791 = vld [vmem:[#allocation2 + $0x4] sm:$0xf]
      %v792 = vld [vmem:[#allocation2 + $0x8] sm:$0x1]
      %v796 = vunpack.c.l.b16 %v790
      %v797 = vunpack.c.l.b16 %v791
      %v798 = vunpack.c.l.b16 %v792
      %v799 = vpack.c.b16 %v797, %v796
      %v800 = vpack.c.b16 %v798, %v798
      %801 = vrot.lane.b32.xlu0 %v799, 120
      %v802 = vpop.permute.xlu0 %801
      %803 = vrot.lane.b32.xlu0 %v800, 120
      %v804 = vpop.permute.xlu0 %803
      %805 = vrot.lane.b32.xlu0 %v799, 88
      %v806 = vpop.permute.xlu0 %805
      %807 = vrot.lane.b32.xlu0 %v800, 88
      %v808 = vpop.permute.xlu0 %807
      %v810 = vsel %vm623, %v802, 0
      %v813 = vsel %vm623, %v804, 0
      %v816 = vsel %vm623, %v806, 0
      %v819 = vsel %vm623, %v808, 0
      %821 = vmatprep.subr.bf16.mxu0 0
      %822 = vmatpush1.bf16.xpose.msra.mxu0 %v816
      %823 = vmatprep.subr.bf16.mxu0 0
      %824 = vmatpush1.bf16.xpose.msra.mxu0 %v819
      %825 = vmatprep.subr.bf16.mxu0 0
      %826 = vmatpush1.bf16.xpose.msra.mxu0 0
      %827 = vmatprep.subr.bf16.mxu0 0
      %828 = vmatpush1.bf16.xpose.msra.mxu0 0
      %829 = vmatprep.subr.bf16.mxu0 0
      %830 = vmatpush1.bf16.xpose.msra.mxu0 0
      %831 = vmatprep.subr.bf16.mxu0 0
      %832 = vmatpush1.bf16.xpose.msra.mxu0 0
      %833 = vmatprep.subr.bf16.mxu0 0
      %834 = vmatpush1.bf16.xpose.msra.mxu0 0
      %835 = vmatprep.subr.bf16.mxu0 0
      %836 = vmatpush1.bf16.xpose.msra.mxu0 0
      %837 = vmatprep.subr.bf16.mxu0 0
      %838 = vmatpush1.bf16.xpose.msra.mxu0 0
      %839 = vmatprep.subr.bf16.mxu0 0
      %840 = vmatpush1.bf16.xpose.msra.mxu0 0
      %841 = vmatprep.subr.bf16.mxu0 0
      %842 = vmatpush1.bf16.xpose.msra.mxu0 0
      %843 = vmatprep.subr.bf16.mxu0 0
      %844 = vmatpush1.bf16.xpose.msra.mxu0 0
      %845 = vmatprep.subr.bf16.mxu0 0
      %846 = vmatpush1.bf16.xpose.msra.mxu0 0
      %847 = vmatprep.subr.bf16.mxu0 0
      %848 = vmatpush1.bf16.xpose.msra.mxu0 0
      %849 = vmatprep.subr.bf16.mxu0 0
      %850 = vmatpush1.bf16.xpose.msra.mxu0 0
      %851 = vmatprep.subr.bf16.mxu0 0
      %852 = vmatpush1.bf16.xpose.msra.mxu0 0
      %853 = vmatprep.mubr.bf16.mxu0 0
      %854 = vmatmul.mubr.bf16.gmra.mrb[0].mxu0 %v810
      %v855 = vpop.f32.mrb[0].mxu0
      %v856 = vadd.f32 0.0, %v855
      %v857 = vpop.f32.mrb[0].mxu0
      %v858 = vpop.f32.mrb[0].mxu0
      %v859 = vadd.f32 0.0, %v858
      %v860 = vpop.f32.mrb[0].mxu0
      %861 = vmatprep.mubr.bf16.mxu0 0
      %862 = vmatmul.mubr.bf16.gmra.mrb[0].mxu0 %v813
      %v863 = vpop.f32.mrb[0].mxu0
      %v864 = vadd.f32 0.0, %v863
      %v865 = vpop.f32.mrb[0].mxu0
      %v866 = vpop.f32.mrb[0].mxu0
      %v867 = vpop.f32.mrb[0].mxu0
      %868 = vdwg.mxu0
      %v869 = vsel %vm684, %v856, -inf
      %870 = vmax.xlane.f32.xlu0 %v869
      %v871 = vpop.xlane.xlu0 %870
      %v872 = vsel %vm684, %v859, -inf
      %873 = vmax.xlane.f32.xlu0 %v872
      %v874 = vpop.xlane.xlu0 %873
      %v875 = vsel %vm691, %v864, -inf
      %876 = vmax.xlane.f32.xlu0 %v875
      %v877 = vpop.xlane.xlu0 %876
      %v878 = vsub.f32 %v856, %v871
      %v879 = vsub.f32 %v859, %v874
      %v880 = vsub.f32 %v864, %v877
      %v881 = vmul.f32 %v878, 1.442695
      %v882 = vpow.pop %v881
      %v883 = vmul.f32 %v879, 1.442695
      %v884 = vpow.pop %v883
      %v885 = vmul.f32 %v880, 1.442695
      %v886 = vpow.pop %v885
      %v887 = vsel %vm684, %v882, 0.0
      %888 = vadd.xlane.f32.xlu0 %v887
      %v889 = vpop.xlane.xlu0 %888
      %v890 = vsel %vm684, %v884, 0.0
      %891 = vadd.xlane.f32.xlu0 %v890
      %v892 = vpop.xlane.xlu0 %891
      %v893 = vsel %vm691, %v886, 0.0
      %894 = vadd.xlane.f32.xlu0 %v893
      %v895 = vpop.xlane.xlu0 %894
      %v896 = vrcp.pop %v889
      %v897 = vrcp.pop %v892
      %v898 = vrcp.pop %v895
      %v899 = vmul.f32 %v882, %v896
      %v900 = vmul.f32 %v884, %v897
      %v901 = vmul.f32 %v886, %v898
      %v902 = vpack.c.bf16 %v900, %v899
      %v903 = vpack.c.bf16 %v901, %v901
      %904 = vrot.lane.b32.xlu0 %v799, 56
      %v905 = vpop.permute.xlu0 %904
      %906 = vrot.lane.b32.xlu0 %v800, 56
      %v907 = vpop.permute.xlu0 %906
      %v910 = vsel %vm684, %v902, 0
      %v913 = vsel %vm684, %v903, 0
      %v916 = vand.u32 %v907, %v734
      %918 = vmatprep.subr.bf16.mxu0 0
      %919 = vmatpush1.bf16.msra.mxu0 %v905
      %920 = vmatprep.subr.bf16.mxu0 0
      %921 = vmatpush1.bf16.msra.mxu0 %v916
      %922 = vmatprep.subr.bf16.mxu0 0
      %923 = vmatpush1.bf16.msra.mxu0 0
      %924 = vmatprep.subr.bf16.mxu0 0
      %925 = vmatpush1.bf16.msra.mxu0 0
      %926 = vmatprep.subr.bf16.mxu0 0
      %927 = vmatpush1.bf16.msra.mxu0 0
      %928 = vmatprep.subr.bf16.mxu0 0
      %929 = vmatpush1.bf16.msra.mxu0 0
      %930 = vmatprep.subr.bf16.mxu0 0
      %931 = vmatpush1.bf16.msra.mxu0 0
      %932 = vmatprep.subr.bf16.mxu0 0
      %933 = vmatpush1.bf16.msra.mxu0 0
      %934 = vmatprep.subr.bf16.mxu0 0
      %935 = vmatpush1.bf16.msra.mxu0 0
      %936 = vmatprep.subr.bf16.mxu0 0
      %937 = vmatpush1.bf16.msra.mxu0 0
      %938 = vmatprep.subr.bf16.mxu0 0
      %939 = vmatpush1.bf16.msra.mxu0 0
      %940 = vmatprep.subr.bf16.mxu0 0
      %941 = vmatpush1.bf16.msra.mxu0 0
      %942 = vmatprep.subr.bf16.mxu0 0
      %943 = vmatpush1.bf16.msra.mxu0 0
      %944 = vmatprep.subr.bf16.mxu0 0
      %945 = vmatpush1.bf16.msra.mxu0 0
      %946 = vmatprep.subr.bf16.mxu0 0
      %947 = vmatpush1.bf16.msra.mxu0 0
      %948 = vmatprep.subr.bf16.mxu0 0
      %949 = vmatpush1.bf16.msra.mxu0 0
      %950 = vmatprep.mubr.bf16.mxu0 0
      %951 = vmatmul.mubr.bf16.gmra.mrb[0].mxu0 %v910
      %v952 = vpop.f32.mrb[0].mxu0
      %v953 = vadd.f32 0.0, %v952
      %v954 = vpop.f32.mrb[0].mxu0
      %v955 = vpop.f32.mrb[0].mxu0
      %v956 = vadd.f32 0.0, %v955
      %v957 = vpop.f32.mrb[0].mxu0
      %958 = vmatprep.mubr.bf16.mxu0 0
      %959 = vmatmul.mubr.bf16.gmra.mrb[0].mxu0 %v913
      %v960 = vpop.f32.mrb[0].mxu0
      %v961 = vadd.f32 0.0, %v960
      %v962 = vpop.f32.mrb[0].mxu0
      %v963 = vpop.f32.mrb[0].mxu0
      %v964 = vpop.f32.mrb[0].mxu0
      %965 = vdwg.mxu0
      %969 = vrot.lane.b32.xlu0 %v953, 8
      %v970 = vpop.permute.xlu0 %969
      %971 = vrot.lane.b32.xlu0 %v956, 8
      %v972 = vpop.permute.xlu0 %971
      %973 = vrot.lane.b32.xlu0 %v961, 8
      %v974 = vpop.permute.xlu0 %973
      %vm978 = vcmask 130112
      %979 = vst.msk [vmem:[#allocation3] sm:$0xff] %vm978, %v970
      %980 = vst.msk [vmem:[#allocation3 + $0x8] sm:$0xff] %vm978, %v972
      %vm981 = vcmask 122944
      %982 = vst.msk [vmem:[#allocation3 + $0x10] sm:$0x1] %vm981, %v974
      %v983 = vld [vmem:[#allocation2] sm:$0xf]
      %v984 = vld [vmem:[#allocation2 + $0x4] sm:$0xf]
      %v985 = vld [vmem:[#allocation2 + $0x8] sm:$0x1]
      %v989 = vunpack.c.l.b16 %v983
      %v990 = vunpack.c.l.b16 %v984
      %v991 = vunpack.c.l.b16 %v985
      %v992 = vpack.c.b16 %v990, %v989
      %v993 = vpack.c.b16 %v991, %v991
      %994 = vrot.lane.b32.xlu0 %v992, 112
      %v995 = vpop.permute.xlu0 %994
      %996 = vrot.lane.b32.xlu0 %v993, 112
      %v997 = vpop.permute.xlu0 %996
      %998 = vrot.lane.b32.xlu0 %v992, 80
      %v999 = vpop.permute.xlu0 %998
      %1000 = vrot.lane.b32.xlu0 %v993, 80
      %v1001 = vpop.permute.xlu0 %1000
      %v1003 = vsel %vm623, %v995, 0
      %v1006 = vsel %vm623, %v997, 0
      %v1009 = vsel %vm623, %v999, 0
      %v1012 = vsel %vm623, %v1001, 0
      %1014 = vmatprep.subr.bf16.mxu0 0
      %1015 = vmatpush1.bf16.xpose.msra.mxu0 %v1009
      %1016 = vmatprep.subr.bf16.mxu0 0
      %1017 = vmatpush1.bf16.xpose.msra.mxu0 %v1012
      %1018 = vmatprep.subr.bf16.mxu0 0
      %1019 = vmatpush1.bf16.xpose.msra.mxu0 0
      %1020 = vmatprep.subr.bf16.mxu0 0
      %1021 = vmatpush1.bf16.xpose.msra.mxu0 0
      %1022 = vmatprep.subr.bf16.mxu0 0
      %1023 = vmatpush1.bf16.xpose.msra.mxu0 0
      %1024 = vmatprep.subr.bf16.mxu0 0
      %1025 = vmatpush1.bf16.xpose.msra.mxu0 0
      %1026 = vmatprep.subr.bf16.mxu0 0
      %1027 = vmatpush1.bf16.xpose.msra.mxu0 0
      %1028 = vmatprep.subr.bf16.mxu0 0
      %1029 = vmatpush1.bf16.xpose.msra.mxu0 0
      %1030 = vmatprep.subr.bf16.mxu0 0
      %1031 = vmatpush1.bf16.xpose.msra.mxu0 0
      %1032 = vmatprep.subr.bf16.mxu0 0
      %1033 = vmatpush1.bf16.xpose.msra.mxu0 0
      %1034 = vmatprep.subr.bf16.mxu0 0
      %1035 = vmatpush1.bf16.xpose.msra.mxu0 0
      %1036 = vmatprep.subr.bf16.mxu0 0
      %1037 = vmatpush1.bf16.xpose.msra.mxu0 0
      %1038 = vmatprep.subr.bf16.mxu0 0
      %1039 = vmatpush1.bf16.xpose.msra.mxu0 0
      %1040 = vmatprep.subr.bf16.mxu0 0
      %1041 = vmatpush1.bf16.xpose.msra.mxu0 0
      %1042 = vmatprep.subr.bf16.mxu0 0
      %1043 = vmatpush1.bf16.xpose.msra.mxu0 0
      %1044 = vmatprep.subr.bf16.mxu0 0
      %1045 = vmatpush1.bf16.xpose.msra.mxu0 0
      %1046 = vmatprep.mubr.bf16.mxu0 0
      %1047 = vmatmul.mubr.bf16.gmra.mrb[0].mxu0 %v1003
      %v1048 = vpop.f32.mrb[0].mxu0
      %v1049 = vadd.f32 0.0, %v1048
      %v1050 = vpop.f32.mrb[0].mxu0
      %v1051 = vpop.f32.mrb[0].mxu0
      %v1052 = vadd.f32 0.0, %v1051
      %v1053 = vpop.f32.mrb[0].mxu0
      %1054 = vmatprep.mubr.bf16.mxu0 0
      %1055 = vmatmul.mubr.bf16.gmra.mrb[0].mxu0 %v1006
      %v1056 = vpop.f32.mrb[0].mxu0
      %v1057 = vadd.f32 0.0, %v1056
      %v1058 = vpop.f32.mrb[0].mxu0
      %v1059 = vpop.f32.mrb[0].mxu0
      %v1060 = vpop.f32.mrb[0].mxu0
      %1061 = vdwg.mxu0
      %v1062 = vsel %vm684, %v1049, -inf
      %1063 = vmax.xlane.f32.xlu0 %v1062
      %v1064 = vpop.xlane.xlu0 %1063
      %v1065 = vsel %vm684, %v1052, -inf
      %1066 = vmax.xlane.f32.xlu0 %v1065
      %v1067 = vpop.xlane.xlu0 %1066
      %v1068 = vsel %vm691, %v1057, -inf
      %1069 = vmax.xlane.f32.xlu0 %v1068
      %v1070 = vpop.xlane.xlu0 %1069
      %v1071 = vsub.f32 %v1049, %v1064
      %v1072 = vsub.f32 %v1052, %v1067
      %v1073 = vsub.f32 %v1057, %v1070
      %v1074 = vmul.f32 %v1071, 1.442695
      %v1075 = vpow.pop %v1074
      %v1076 = vmul.f32 %v1072, 1.442695
      %v1077 = vpow.pop %v1076
      %v1078 = vmul.f32 %v1073, 1.442695
      %v1079 = vpow.pop %v1078
      %v1080 = vsel %vm684, %v1075, 0.0
      %1081 = vadd.xlane.f32.xlu0 %v1080
      %v1082 = vpop.xlane.xlu0 %1081
      %v1083 = vsel %vm684, %v1077, 0.0
      %1084 = vadd.xlane.f32.xlu0 %v1083
      %v1085 = vpop.xlane.xlu0 %1084
      %v1086 = vsel %vm691, %v1079, 0.0
      %1087 = vadd.xlane.f32.xlu0 %v1086
      %v1088 = vpop.xlane.xlu0 %1087
      %v1089 = vrcp.pop %v1082
      %v1090 = vrcp.pop %v1085
      %v1091 = vrcp.pop %v1088
      %v1092 = vmul.f32 %v1075, %v1089
      %v1093 = vmul.f32 %v1077, %v1090
      %v1094 = vmul.f32 %v1079, %v1091
      %v1095 = vpack.c.bf16 %v1093, %v1092
      %v1096 = vpack.c.bf16 %v1094, %v1094
      %1097 = vrot.lane.b32.xlu0 %v992, 48
      %v1098 = vpop.permute.xlu0 %1097
      %1099 = vrot.lane.b32.xlu0 %v993, 48
      %v1100 = vpop.permute.xlu0 %1099
      %v1103 = vsel %vm684, %v1095, 0
      %v1106 = vsel %vm684, %v1096, 0
      %v1109 = vand.u32 %v1100, %v734
      %1111 = vmatprep.subr.bf16.mxu0 0
      %1112 = vmatpush1.bf16.msra.mxu0 %v1098
      %1113 = vmatprep.subr.bf16.mxu0 0
      %1114 = vmatpush1.bf16.msra.mxu0 %v1109
      %1115 = vmatprep.subr.bf16.mxu0 0
      %1116 = vmatpush1.bf16.msra.mxu0 0
      %1117 = vmatprep.subr.bf16.mxu0 0
      %1118 = vmatpush1.bf16.msra.mxu0 0
      %1119 = vmatprep.subr.bf16.mxu0 0
      %1120 = vmatpush1.bf16.msra.mxu0 0
      %1121 = vmatprep.subr.bf16.mxu0 0
      %1122 = vmatpush1.bf16.msra.mxu0 0
      %1123 = vmatprep.subr.bf16.mxu0 0
      %1124 = vmatpush1.bf16.msra.mxu0 0
      %1125 = vmatprep.subr.bf16.mxu0 0
      %1126 = vmatpush1.bf16.msra.mxu0 0
      %1127 = vmatprep.subr.bf16.mxu0 0
      %1128 = vmatpush1.bf16.msra.mxu0 0
      %1129 = vmatprep.subr.bf16.mxu0 0
      %1130 = vmatpush1.bf16.msra.mxu0 0
      %1131 = vmatprep.subr.bf16.mxu0 0
      %1132 = vmatpush1.bf16.msra.mxu0 0
      %1133 = vmatprep.subr.bf16.mxu0 0
      %1134 = vmatpush1.bf16.msra.mxu0 0
      %1135 = vmatprep.subr.bf16.mxu0 0
      %1136 = vmatpush1.bf16.msra.mxu0 0
      %1137 = vmatprep.subr.bf16.mxu0 0
      %1138 = vmatpush1.bf16.msra.mxu0 0
      %1139 = vmatprep.subr.bf16.mxu0 0
      %1140 = vmatpush1.bf16.msra.mxu0 0
      %1141 = vmatprep.subr.bf16.mxu0 0
      %1142 = vmatpush1.bf16.msra.mxu0 0
      %1143 = vmatprep.mubr.bf16.mxu0 0
      %1144 = vmatmul.mubr.bf16.gmra.mrb[0].mxu0 %v1103
      %v1145 = vpop.f32.mrb[0].mxu0
      %v1146 = vadd.f32 0.0, %v1145
      %v1147 = vpop.f32.mrb[0].mxu0
      %v1148 = vpop.f32.mrb[0].mxu0
      %v1149 = vadd.f32 0.0, %v1148
      %v1150 = vpop.f32.mrb[0].mxu0
      %1151 = vmatprep.mubr.bf16.mxu0 0
      %1152 = vmatmul.mubr.bf16.gmra.mrb[0].mxu0 %v1106
      %v1153 = vpop.f32.mrb[0].mxu0
      %v1154 = vadd.f32 0.0, %v1153
      %v1155 = vpop.f32.mrb[0].mxu0
      %v1156 = vpop.f32.mrb[0].mxu0
      %v1157 = vpop.f32.mrb[0].mxu0
      %1158 = vdwg.mxu0
      %1162 = vrot.lane.b32.xlu0 %v1146, 16
      %v1163 = vpop.permute.xlu0 %1162
      %1164 = vrot.lane.b32.xlu0 %v1149, 16
      %v1165 = vpop.permute.xlu0 %1164
      %1166 = vrot.lane.b32.xlu0 %v1154, 16
      %v1167 = vpop.permute.xlu0 %1166
      %vm1171 = vcmask 195712
      %1172 = vst.msk [vmem:[#allocation3] sm:$0xff] %vm1171, %v1163
      %1173 = vst.msk [vmem:[#allocation3 + $0x8] sm:$0xff] %vm1171, %v1165
      %vm1174 = vcmask 188544
      %1175 = vst.msk [vmem:[#allocation3 + $0x10] sm:$0x1] %vm1174, %v1167
      %v1176 = vld [vmem:[#allocation2] sm:$0xf]
      %v1177 = vld [vmem:[#allocation2 + $0x4] sm:$0xf]
      %v1178 = vld [vmem:[#allocation2 + $0x8] sm:$0x1]
      %v1182 = vunpack.c.l.b16 %v1176
      %v1183 = vunpack.c.l.b16 %v1177
      %v1184 = vunpack.c.l.b16 %v1178
      %v1185 = vpack.c.b16 %v1183, %v1182
      %v1186 = vpack.c.b16 %v1184, %v1184
      %1187 = vrot.lane.b32.xlu0 %v1185, 104
      %v1188 = vpop.permute.xlu0 %1187
      %1189 = vrot.lane.b32.xlu0 %v1186, 104
      %v1190 = vpop.permute.xlu0 %1189
      %1191 = vrot.lane.b32.xlu0 %v1185, 72
      %v1192 = vpop.permute.xlu0 %1191
      %1193 = vrot.lane.b32.xlu0 %v1186, 72
      %v1194 = vpop.permute.xlu0 %1193
      %v1196 = vsel %vm623, %v1188, 0
      %v1199 = vsel %vm623, %v1190, 0
      %v1202 = vsel %vm623, %v1192, 0
      %v1205 = vsel %vm623, %v1194, 0
      %1207 = vmatprep.subr.bf16.mxu0 0
      %1208 = vmatpush1.bf16.xpose.msra.mxu0 %v1202
      %1209 = vmatprep.subr.bf16.mxu0 0
      %1210 = vmatpush1.bf16.xpose.msra.mxu0 %v1205
      %1211 = vmatprep.subr.bf16.mxu0 0
      %1212 = vmatpush1.bf16.xpose.msra.mxu0 0
      %1213 = vmatprep.subr.bf16.mxu0 0
      %1214 = vmatpush1.bf16.xpose.msra.mxu0 0
      %1215 = vmatprep.subr.bf16.mxu0 0
      %1216 = vmatpush1.bf16.xpose.msra.mxu0 0
      %1217 = vmatprep.subr.bf16.mxu0 0
      %1218 = vmatpush1.bf16.xpose.msra.mxu0 0
      %1219 = vmatprep.subr.bf16.mxu0 0
      %1220 = vmatpush1.bf16.xpose.msra.mxu0 0
      %1221 = vmatprep.subr.bf16.mxu0 0
      %1222 = vmatpush1.bf16.xpose.msra.mxu0 0
      %1223 = vmatprep.subr.bf16.mxu0 0
      %1224 = vmatpush1.bf16.xpose.msra.mxu0 0
      %1225 = vmatprep.subr.bf16.mxu0 0
      %1226 = vmatpush1.bf16.xpose.msra.mxu0 0
      %1227 = vmatprep.subr.bf16.mxu0 0
      %1228 = vmatpush1.bf16.xpose.msra.mxu0 0
      %1229 = vmatprep.subr.bf16.mxu0 0
      %1230 = vmatpush1.bf16.xpose.msra.mxu0 0
      %1231 = vmatprep.subr.bf16.mxu0 0
      %1232 = vmatpush1.bf16.xpose.msra.mxu0 0
      %1233 = vmatprep.subr.bf16.mxu0 0
      %1234 = vmatpush1.bf16.xpose.msra.mxu0 0
      %1235 = vmatprep.subr.bf16.mxu0 0
      %1236 = vmatpush1.bf16.xpose.msra.mxu0 0
      %1237 = vmatprep.subr.bf16.mxu0 0
      %1238 = vmatpush1.bf16.xpose.msra.mxu0 0
      %1239 = vmatprep.mubr.bf16.mxu0 0
      %1240 = vmatmul.mubr.bf16.gmra.mrb[0].mxu0 %v1196
      %v1241 = vpop.f32.mrb[0].mxu0
      %v1242 = vadd.f32 0.0, %v1241
      %v1243 = vpop.f32.mrb[0].mxu0
      %v1244 = vpop.f32.mrb[0].mxu0
      %v1245 = vadd.f32 0.0, %v1244
      %v1246 = vpop.f32.mrb[0].mxu0
      %1247 = vmatprep.mubr.bf16.mxu0 0
      %1248 = vmatmul.mubr.bf16.gmra.mrb[0].mxu0 %v1199
      %v1249 = vpop.f32.mrb[0].mxu0
      %v1250 = vadd.f32 0.0, %v1249
      %v1251 = vpop.f32.mrb[0].mxu0
      %v1252 = vpop.f32.mrb[0].mxu0
      %v1253 = vpop.f32.mrb[0].mxu0
      %1254 = vdwg.mxu0
      %v1255 = vsel %vm684, %v1242, -inf
      %1256 = vmax.xlane.f32.xlu0 %v1255
      %v1257 = vpop.xlane.xlu0 %1256
      %v1258 = vsel %vm684, %v1245, -inf
      %1259 = vmax.xlane.f32.xlu0 %v1258
      %v1260 = vpop.xlane.xlu0 %1259
      %v1261 = vsel %vm691, %v1250, -inf
      %1262 = vmax.xlane.f32.xlu0 %v1261
      %v1263 = vpop.xlane.xlu0 %1262
      %v1264 = vsub.f32 %v1242, %v1257
      %v1265 = vsub.f32 %v1245, %v1260
      %v1266 = vsub.f32 %v1250, %v1263
      %v1267 = vmul.f32 %v1264, 1.442695
      %v1268 = vpow.pop %v1267
      %v1269 = vmul.f32 %v1265, 1.442695
      %v1270 = vpow.pop %v1269
      %v1271 = vmul.f32 %v1266, 1.442695
      %v1272 = vpow.pop %v1271
      %v1273 = vsel %vm684, %v1268, 0.0
      %1274 = vadd.xlane.f32.xlu0 %v1273
      %v1275 = vpop.xlane.xlu0 %1274
      %v1276 = vsel %vm684, %v1270, 0.0
      %1277 = vadd.xlane.f32.xlu0 %v1276
      %v1278 = vpop.xlane.xlu0 %1277
      %v1279 = vsel %vm691, %v1272, 0.0
      %1280 = vadd.xlane.f32.xlu0 %v1279
      %v1281 = vpop.xlane.xlu0 %1280
      %v1282 = vrcp.pop %v1275
      %v1283 = vrcp.pop %v1278
      %v1284 = vrcp.pop %v1281
      %v1285 = vmul.f32 %v1268, %v1282
      %v1286 = vmul.f32 %v1270, %v1283
      %v1287 = vmul.f32 %v1272, %v1284
      %v1288 = vpack.c.bf16 %v1286, %v1285
      %v1289 = vpack.c.bf16 %v1287, %v1287
      %1290 = vrot.lane.b32.xlu0 %v1185, 40
      %v1291 = vpop.permute.xlu0 %1290
      %1292 = vrot.lane.b32.xlu0 %v1186, 40
      %v1293 = vpop.permute.xlu0 %1292
      %v1296 = vsel %vm684, %v1288, 0
      %v1299 = vsel %vm684, %v1289, 0
      %v1302 = vand.u32 %v1293, %v734
      %1304 = vmatprep.subr.bf16.mxu0 0
      %1305 = vmatpush1.bf16.msra.mxu0 %v1291
      %1306 = vmatprep.subr.bf16.mxu0 0
      %1307 = vmatpush1.bf16.msra.mxu0 %v1302
      %1308 = vmatprep.subr.bf16.mxu0 0
      %1309 = vmatpush1.bf16.msra.mxu0 0
      %1310 = vmatprep.subr.bf16.mxu0 0
      %1311 = vmatpush1.bf16.msra.mxu0 0
      %1312 = vmatprep.subr.bf16.mxu0 0
      %1313 = vmatpush1.bf16.msra.mxu0 0
      %1314 = vmatprep.subr.bf16.mxu0 0
      %1315 = vmatpush1.bf16.msra.mxu0 0
      %1316 = vmatprep.subr.bf16.mxu0 0
      %1317 = vmatpush1.bf16.msra.mxu0 0
      %1318 = vmatprep.subr.bf16.mxu0 0
      %1319 = vmatpush1.bf16.msra.mxu0 0
      %1320 = vmatprep.subr.bf16.mxu0 0
      %1321 = vmatpush1.bf16.msra.mxu0 0
      %1322 = vmatprep.subr.bf16.mxu0 0
      %1323 = vmatpush1.bf16.msra.mxu0 0
      %1324 = vmatprep.subr.bf16.mxu0 0
      %1325 = vmatpush1.bf16.msra.mxu0 0
      %1326 = vmatprep.subr.bf16.mxu0 0
      %1327 = vmatpush1.bf16.msra.mxu0 0
      %1328 = vmatprep.subr.bf16.mxu0 0
      %1329 = vmatpush1.bf16.msra.mxu0 0
      %1330 = vmatprep.subr.bf16.mxu0 0
      %1331 = vmatpush1.bf16.msra.mxu0 0
      %1332 = vmatprep.subr.bf16.mxu0 0
      %1333 = vmatpush1.bf16.msra.mxu0 0
      %1334 = vmatprep.subr.bf16.mxu0 0
      %1335 = vmatpush1.bf16.msra.mxu0 0
      %1336 = vmatprep.mubr.bf16.mxu0 0
      %1337 = vmatmul.mubr.bf16.gmra.mrb[0].mxu0 %v1296
      %v1338 = vpop.f32.mrb[0].mxu0
      %v1339 = vadd.f32 0.0, %v1338
      %v1340 = vpop.f32.mrb[0].mxu0
      %v1341 = vpop.f32.mrb[0].mxu0
      %v1342 = vadd.f32 0.0, %v1341
      %v1343 = vpop.f32.mrb[0].mxu0
      %1344 = vmatprep.mubr.bf16.mxu0 0
      %1345 = vmatmul.mubr.bf16.gmra.mrb[0].mxu0 %v1299
      %v1346 = vpop.f32.mrb[0].mxu0
      %v1347 = vadd.f32 0.0, %v1346
      %v1348 = vpop.f32.mrb[0].mxu0
      %v1349 = vpop.f32.mrb[0].mxu0
      %v1350 = vpop.f32.mrb[0].mxu0
      %1351 = vdwg.mxu0
      %1355 = vrot.lane.b32.xlu0 %v1339, 24
      %v1356 = vpop.permute.xlu0 %1355
      %1357 = vrot.lane.b32.xlu0 %v1342, 24
      %v1358 = vpop.permute.xlu0 %1357
      %1359 = vrot.lane.b32.xlu0 %v1347, 24
      %v1360 = vpop.permute.xlu0 %1359
      %vm1364 = vcmask 261312
      %1365 = vst.msk [vmem:[#allocation3] sm:$0xff] %vm1364, %v1356
      %1366 = vst.msk [vmem:[#allocation3 + $0x8] sm:$0xff] %vm1364, %v1358
      %vm1367 = vcmask 254144
      %1368 = vst.msk [vmem:[#allocation3 + $0x10] sm:$0x1] %vm1367, %v1360
      %v1369 = vld [vmem:[#allocation3] sm:$0xff]
      %v1370 = vld [vmem:[#allocation3 + $0x8] sm:$0xff]
      %v1371 = vld [vmem:[#allocation3 + $0x10] sm:$0x1]
      %v1372 = vpack.c.bf16 %v1370, %v1369
      %v1373 = vpack.c.bf16 %v1371, %v1371
      %v1374 = vld [vmem:[%s5] sm:$0xf]
      %v1375 = vld [vmem:[%s5 + $0x4] sm:$0xf]
      %v1376 = vld [vmem:[%s5 + $0x8] sm:$0xf]
      %v1377 = vld [vmem:[%s5 + $0xc] sm:$0xf]
      %v1382 = vunpack.c.l.b16 %v1374
      %v1383 = vunpack.c.l.b16 %v1375
      %v1384 = vunpack.c.l.b16 %v1376
      %v1385 = vunpack.c.l.b16 %v1377
      %v1386 = vpack.c.b16 %v1383, %v1382
      %v1387 = vpack.c.b16 %v1385, %v1384
      %v1391 = vsel %vm447, %v1372, 0
      %v1394 = vsel %vm447, %v1373, 0
      %1396 = vmatprep.subr.bf16.mxu0 0
      %1397 = vmatpush1.bf16.msra.mxu0 %v1386
      %1398 = vmatprep.subr.bf16.mxu0 0
      %1399 = vmatpush1.bf16.msra.mxu0 %v1387
      %1400 = vmatprep.subr.bf16.mxu0 0
      %1401 = vmatpush1.bf16.msra.mxu0 0
      %1402 = vmatprep.subr.bf16.mxu0 0
      %1403 = vmatpush1.bf16.msra.mxu0 0
      %1404 = vmatprep.subr.bf16.mxu0 0
      %1405 = vmatpush1.bf16.msra.mxu0 0
      %1406 = vmatprep.subr.bf16.mxu0 0
      %1407 = vmatpush1.bf16.msra.mxu0 0
      %1408 = vmatprep.subr.bf16.mxu0 0
      %1409 = vmatpush1.bf16.msra.mxu0 0
      %1410 = vmatprep.subr.bf16.mxu0 0
      %1411 = vmatpush1.bf16.msra.mxu0 0
      %1412 = vmatprep.subr.bf16.mxu0 0
      %1413 = vmatpush1.bf16.msra.mxu0 0
      %1414 = vmatprep.subr.bf16.mxu0 0
      %1415 = vmatpush1.bf16.msra.mxu0 0
      %1416 = vmatprep.subr.bf16.mxu0 0
      %1417 = vmatpush1.bf16.msra.mxu0 0
      %1418 = vmatprep.subr.bf16.mxu0 0
      %1419 = vmatpush1.bf16.msra.mxu0 0
      %1420 = vmatprep.subr.bf16.mxu0 0
      %1421 = vmatpush1.bf16.msra.mxu0 0
      %1422 = vmatprep.subr.bf16.mxu0 0
      %1423 = vmatpush1.bf16.msra.mxu0 0
      %1424 = vmatprep.subr.bf16.mxu0 0
      %1425 = vmatpush1.bf16.msra.mxu0 0
      %1426 = vmatprep.subr.bf16.mxu0 0
      %1427 = vmatpush1.bf16.msra.mxu0 0
      %1428 = vmatprep.mubr.bf16.mxu0 0
      %1429 = vmatmul.mubr.bf16.gmra.mrb[0].mxu0 %v1391
      %v1430 = vpop.f32.mrb[0].mxu0
      %v1431 = vadd.f32 0.0, %v1430
      %v1432 = vpop.f32.mrb[0].mxu0
      %v1433 = vpop.f32.mrb[0].mxu0
      %v1434 = vadd.f32 0.0, %v1433
      %v1435 = vpop.f32.mrb[0].mxu0
      %1436 = vmatprep.mubr.bf16.mxu0 0
      %1437 = vmatmul.mubr.bf16.gmra.mrb[0].mxu0 %v1394
      %v1438 = vpop.f32.mrb[0].mxu0
      %v1439 = vadd.f32 0.0, %v1438
      %v1440 = vpop.f32.mrb[0].mxu0
      %v1441 = vpop.f32.mrb[0].mxu0
      %v1442 = vpop.f32.mrb[0].mxu0
      %1443 = vdwg.mxu0
      %v1444 = vadd.f32 %v442, %v1431
      %v1445 = vadd.f32 %v443, %v1434
      %v1446 = vadd.f32 %v444, %v1439
      %v1447 = vld [vmem:[%s6] sm:$0x1]
      %v1449 = vlaneseq
      %v1450 = vshrl.u32 %v1449, 7
      %v1451 = vsub.s32 0, %v1450
      %v1452 = vrot.slane %v1447, %v1451
      %v1454 = vadd.f32 %v1444, %v1452
      %v1455 = vadd.f32 %v1445, %v1452
      %v1456 = vadd.f32 %v1446, %v1452
      %1457 = vst.msk [vmem:[#allocation4] sm:$0xff] %vm447, %v1454
      %1458 = vst.msk [vmem:[#allocation4 + $0x8] sm:$0xff] %vm447, %v1455
      %1459 = vst.msk [vmem:[#allocation4 + $0x10] sm:$0x1] %vm454, %v1456
      %v1460 = vld [vmem:[#allocation4] sm:$0xff]
      %v1461 = vld [vmem:[#allocation4 + $0x8] sm:$0xff]
      %v1462 = vld [vmem:[#allocation4 + $0x10] sm:$0x1]
      %v1463 = vld [vmem:[%s7] sm:$0x1]
      %v1464 = vld [vmem:[%s8] sm:$0x1]
      %v1465 = vsel %vm447, %v1460, 0.0
      %1466 = vadd.xlane.f32.xlu0 %v1465
      %v1467 = vpop.xlane.xlu0 %1466
      %v1468 = vsel %vm447, %v1461, 0.0
      %1469 = vadd.xlane.f32.xlu0 %v1468
      %v1470 = vpop.xlane.xlu0 %1469
      %v1471 = vsel %vm454, %v1462, 0.0
      %1472 = vadd.xlane.f32.xlu0 %v1471
      %v1473 = vpop.xlane.xlu0 %1472
      %v1474 = vmul.f32 %v1467, %v458
      %v1475 = vmul.f32 %v1470, %v458
      %v1476 = vmul.f32 %v1473, %v458
      %v1477 = vsub.f32 %v1460, %v1474
      %v1478 = vsub.f32 %v1461, %v1475
      %v1479 = vsub.f32 %v1462, %v1476
      %v1480 = vmul.f32 %v1477, %v1477
      %v1481 = vmul.f32 %v1478, %v1478
      %v1482 = vmul.f32 %v1479, %v1479
      %v1483 = vsel %vm447, %v1480, 0.0
      %1484 = vadd.xlane.f32.xlu0 %v1483
      %v1485 = vpop.xlane.xlu0 %1484
      %v1486 = vsel %vm447, %v1481, 0.0
      %1487 = vadd.xlane.f32.xlu0 %v1486
      %v1488 = vpop.xlane.xlu0 %1487
      %v1489 = vsel %vm454, %v1482, 0.0
      %1490 = vadd.xlane.f32.xlu0 %v1489
      %v1491 = vpop.xlane.xlu0 %1490
      %v1492 = vmul.f32 %v1485, %v458
      %v1493 = vmul.f32 %v1488, %v458
      %v1494 = vmul.f32 %v1491, %v458
      %v1495 = vadd.f32 %v1492, 1e-06
      %v1496 = vadd.f32 %v1493, 1e-06
      %v1497 = vadd.f32 %v1494, 1e-06
      %v1498 = vrsqrt.pop %v1495
      %v1499 = vrsqrt.pop %v1496
      %v1500 = vrsqrt.pop %v1497
      %v1501 = vmul.f32 %v1477, %v1498
      %v1502 = vmul.f32 %v1478, %v1499
      %v1503 = vmul.f32 %v1479, %v1500
      %v1505 = vlaneseq
      %v1506 = vshrl.u32 %v1505, 7
      %v1507 = vsub.s32 0, %v1506
      %v1508 = vrot.slane %v1463, %v1507
      %v1510 = vmul.f32 %v1501, %v1508
      %v1511 = vmul.f32 %v1502, %v1508
      %v1512 = vmul.f32 %v1503, %v1508
      %v1514 = vlaneseq
      %v1515 = vshrl.u32 %v1514, 7
      %v1516 = vsub.s32 0, %v1515
      %v1517 = vrot.slane %v1464, %v1516
      %v1519 = vadd.f32 %v1510, %v1517
      %v1520 = vadd.f32 %v1511, %v1517
      %v1521 = vadd.f32 %v1512, %v1517
      %v1522 = vpack.c.bf16 %v1520, %v1519
      %v1523 = vpack.c.bf16 %v1521, %v1521
      %v1524 = vld [vmem:[%s9] sm:$0xf]
      %v1525 = vld [vmem:[%s9 + $0x4] sm:$0xf]
      %v1526 = vld [vmem:[%s9 + $0x8] sm:$0xf]
      %v1527 = vld [vmem:[%s9 + $0xc] sm:$0xf]
      %v1528 = vld [vmem:[%s10] sm:$0x1]
      %v1530 = vlaneseq
      %v1531 = vshrl.u32 %v1530, 7
      %v1532 = vsub.s32 0, %v1531
      %v1533 = vrot.slane %v1528, %v1532
      %v1539 = vunpack.c.l.b16 %v1524
      %v1540 = vunpack.c.l.b16 %v1525
      %v1541 = vunpack.c.l.b16 %v1526
      %v1542 = vunpack.c.l.b16 %v1527
      %v1543 = vpack.c.b16 %v1540, %v1539
      %v1544 = vpack.c.b16 %v1542, %v1541
      %v1548 = vsel %vm447, %v1522, 0
      %v1551 = vsel %vm447, %v1523, 0
      %1553 = vmatprep.subr.bf16.mxu0 0
      %1554 = vmatpush1.bf16.msra.mxu0 %v1543
      %1555 = vmatprep.subr.bf16.mxu0 0
      %1556 = vmatpush1.bf16.msra.mxu0 %v1544
      %1557 = vmatprep.subr.bf16.mxu0 0
      %1558 = vmatpush1.bf16.msra.mxu0 0
      %1559 = vmatprep.subr.bf16.mxu0 0
      %1560 = vmatpush1.bf16.msra.mxu0 0
      %1561 = vmatprep.subr.bf16.mxu0 0
      %1562 = vmatpush1.bf16.msra.mxu0 0
      %1563 = vmatprep.subr.bf16.mxu0 0
      %1564 = vmatpush1.bf16.msra.mxu0 0
      %1565 = vmatprep.subr.bf16.mxu0 0
      %1566 = vmatpush1.bf16.msra.mxu0 0
      %1567 = vmatprep.subr.bf16.mxu0 0
      %1568 = vmatpush1.bf16.msra.mxu0 0
      %1569 = vmatprep.subr.bf16.mxu0 0
      %1570 = vmatpush1.bf16.msra.mxu0 0
      %1571 = vmatprep.subr.bf16.mxu0 0
      %1572 = vmatpush1.bf16.msra.mxu0 0
      %1573 = vmatprep.subr.bf16.mxu0 0
      %1574 = vmatpush1.bf16.msra.mxu0 0
      %1575 = vmatprep.subr.bf16.mxu0 0
      %1576 = vmatpush1.bf16.msra.mxu0 0
      %1577 = vmatprep.subr.bf16.mxu0 0
      %1578 = vmatpush1.bf16.msra.mxu0 0
      %1579 = vmatprep.subr.bf16.mxu0 0
      %1580 = vmatpush1.bf16.msra.mxu0 0
      %1581 = vmatprep.subr.bf16.mxu0 0
      %1582 = vmatpush1.bf16.msra.mxu0 0
      %1583 = vmatprep.subr.bf16.mxu0 0
      %1584 = vmatpush1.bf16.msra.mxu0 0
      %1585 = vmatprep.mubr.bf16.mxu0 0
      %1586 = vmatmul.mubr.bf16.gmra.mrb[0].mxu0 %v1548
      %v1587 = vpop.f32.mrb[0].mxu0
      %v1588 = vadd.f32 %v1533, %v1587
      %v1589 = vpop.f32.mrb[0].mxu0
      %v1590 = vpop.f32.mrb[0].mxu0
      %v1591 = vadd.f32 %v1533, %v1590
      %v1592 = vpop.f32.mrb[0].mxu0
      %1593 = vmatprep.mubr.bf16.mxu0 0
      %1594 = vmatmul.mubr.bf16.gmra.mrb[0].mxu0 %v1551
      %v1595 = vpop.f32.mrb[0].mxu0
      %v1596 = vadd.f32 %v1533, %v1595
      %v1597 = vpop.f32.mrb[0].mxu0
      %v1598 = vpop.f32.mrb[0].mxu0
      %v1599 = vpop.f32.mrb[0].mxu0
      %1600 = vdwg.mxu0
      %v1601 = vmul.f32 %v1588, 0.5
      %v1602 = vmul.f32 %v1591, 0.5
      %v1603 = vmul.f32 %v1596, 0.5
      %v1604 = vmul.f32 %v1588, 0.044715
      %v1605 = vmul.f32 %v1591, 0.044715
      %v1606 = vmul.f32 %v1596, 0.044715
      %v1607 = vmul.f32 %v1604, %v1588
      %v1608 = vmul.f32 %v1605, %v1591
      %v1609 = vmul.f32 %v1606, %v1596
      %v1610 = vmul.f32 %v1607, %v1588
      %v1611 = vmul.f32 %v1608, %v1591
      %v1612 = vmul.f32 %v1609, %v1596
      %v1613 = vadd.f32 %v1588, %v1610
      %v1614 = vadd.f32 %v1591, %v1611
      %v1615 = vadd.f32 %v1596, %v1612
      %v1616 = vmul.f32 %v1613, 0.7978846
      %v1617 = vmul.f32 %v1614, 0.7978846
      %v1618 = vmul.f32 %v1615, 0.7978846
      %v1619 = vtanh.pop %v1616
      %v1620 = vtanh.pop %v1617
      %v1621 = vtanh.pop %v1618
      %v1622 = vadd.f32 %v1619, 1.0
      %v1623 = vadd.f32 %v1620, 1.0
      %v1624 = vadd.f32 %v1621, 1.0
      %v1625 = vmul.f32 %v1601, %v1622
      %v1626 = vmul.f32 %v1602, %v1623
      %v1627 = vmul.f32 %v1603, %v1624
      %v1628 = vpack.c.bf16 %v1626, %v1625
      %v1629 = vpack.c.bf16 %v1627, %v1627
      %v1630 = vld [vmem:[%s11] sm:$0xf]
      %v1631 = vld [vmem:[%s11 + $0x4] sm:$0xf]
      %v1632 = vld [vmem:[%s11 + $0x8] sm:$0xf]
      %v1633 = vld [vmem:[%s11 + $0xc] sm:$0xf]
      %v1634 = vld [vmem:[%s11 + $0x10] sm:$0xf]
      %v1635 = vld [vmem:[%s11 + $0x14] sm:$0xf]
      %v1636 = vld [vmem:[%s11 + $0x18] sm:$0xf]
      %v1637 = vld [vmem:[%s11 + $0x1c] sm:$0xf]
      %v1638 = vld [vmem:[%s11 + $0x20] sm:$0xf]
      %v1639 = vld [vmem:[%s11 + $0x24] sm:$0xf]
      %v1640 = vld [vmem:[%s11 + $0x28] sm:$0xf]
      %v1641 = vld [vmem:[%s11 + $0x2c] sm:$0xf]
      %v1642 = vld [vmem:[%s11 + $0x30] sm:$0xf]
      %v1643 = vld [vmem:[%s11 + $0x34] sm:$0xf]
      %v1644 = vld [vmem:[%s11 + $0x38] sm:$0xf]
      %v1645 = vld [vmem:[%s11 + $0x3c] sm:$0xf]
      %v1662 = vunpack.c.l.b16 %v1630
      %v1663 = vunpack.c.l.b16 %v1631
      %v1664 = vunpack.c.l.b16 %v1632
      %v1665 = vunpack.c.l.b16 %v1633
      %v1666 = vunpack.c.l.b16 %v1634
      %v1667 = vunpack.c.l.b16 %v1635
      %v1668 = vunpack.c.l.b16 %v1636
      %v1669 = vunpack.c.l.b16 %v1637
      %v1670 = vunpack.c.l.b16 %v1638
      %v1671 = vunpack.c.l.b16 %v1639
      %v1672 = vunpack.c.l.b16 %v1640
      %v1673 = vunpack.c.l.b16 %v1641
      %v1674 = vunpack.c.l.b16 %v1642
      %v1675 = vunpack.c.l.b16 %v1643
      %v1676 = vunpack.c.l.b16 %v1644
      %v1677 = vunpack.c.l.b16 %v1645
      %v1678 = vpack.c.b16 %v1663, %v1662
      %v1679 = vpack.c.b16 %v1665, %v1664
      %v1680 = vpack.c.b16 %v1667, %v1666
      %v1681 = vpack.c.b16 %v1669, %v1668
      %v1682 = vpack.c.b16 %v1671, %v1670
      %v1683 = vpack.c.b16 %v1673, %v1672
      %v1684 = vpack.c.b16 %v1675, %v1674
      %v1685 = vpack.c.b16 %v1677, %v1676
      %1694 = vmatprep.subr.bf16.mxu0 0
      %1695 = vmatpush1.bf16.msra.mxu0 %v1678
      %1696 = vmatprep.subr.bf16.mxu0 0
      %1697 = vmatpush1.bf16.msra.mxu0 %v1679
      %1698 = vmatprep.subr.bf16.mxu0 0
      %1699 = vmatpush1.bf16.msra.mxu0 %v1680
      %1700 = vmatprep.subr.bf16.mxu0 0
      %1701 = vmatpush1.bf16.msra.mxu0 %v1681
      %1702 = vmatprep.subr.bf16.mxu0 0
      %1703 = vmatpush1.bf16.msra.mxu0 %v1682
      %1704 = vmatprep.subr.bf16.mxu0 0
      %1705 = vmatpush1.bf16.msra.mxu0 %v1683
      %1706 = vmatprep.subr.bf16.mxu0 0
      %1707 = vmatpush1.bf16.msra.mxu0 %v1684
      %1708 = vmatprep.subr.bf16.mxu0 0
      %1709 = vmatpush1.bf16.msra.mxu0 %v1685
      %1710 = vmatprep.subr.bf16.mxu0 0
      %1711 = vmatpush1.bf16.msra.mxu0 0
      %1712 = vmatprep.subr.bf16.mxu0 0
      %1713 = vmatpush1.bf16.msra.mxu0 0
      %1714 = vmatprep.subr.bf16.mxu0 0
      %1715 = vmatpush1.bf16.msra.mxu0 0
      %1716 = vmatprep.subr.bf16.mxu0 0
      %1717 = vmatpush1.bf16.msra.mxu0 0
      %1718 = vmatprep.subr.bf16.mxu0 0
      %1719 = vmatpush1.bf16.msra.mxu0 0
      %1720 = vmatprep.subr.bf16.mxu0 0
      %1721 = vmatpush1.bf16.msra.mxu0 0
      %1722 = vmatprep.subr.bf16.mxu0 0
      %1723 = vmatpush1.bf16.msra.mxu0 0
      %1724 = vmatprep.subr.bf16.mxu0 0
      %1725 = vmatpush1.bf16.msra.mxu0 0
      %1726 = vmatprep.mubr.bf16.mxu0 0
      %1727 = vmatmul.mubr.bf16.gmra.mrb[0].mxu0 %v1628
      %v1728 = vpop.f32.mrb[0].mxu0
      %v1729 = vadd.f32 0.0, %v1728
      %v1730 = vpop.f32.mrb[0].mxu0
      %v1731 = vpop.f32.mrb[0].mxu0
      %v1732 = vadd.f32 0.0, %v1731
      %v1733 = vpop.f32.mrb[0].mxu0
      %1734 = vmatprep.mubr.bf16.mxu0 0
      %1735 = vmatmul.mubr.bf16.gmra.mrb[0].mxu0 %v1629
      %v1736 = vpop.f32.mrb[0].mxu0
      %v1737 = vadd.f32 0.0, %v1736
      %v1738 = vpop.f32.mrb[0].mxu0
      %v1739 = vpop.f32.mrb[0].mxu0
      %v1740 = vpop.f32.mrb[0].mxu0
      %1741 = vdwg.mxu0
      %v1742 = vadd.f32 %v1460, %v1729
      %v1743 = vadd.f32 %v1461, %v1732
      %v1744 = vadd.f32 %v1462, %v1737
      %v1745 = vld [vmem:[%s12] sm:$0x1]
      %v1747 = vlaneseq
      %v1748 = vshrl.u32 %v1747, 7
      %v1749 = vsub.s32 0, %v1748
      %v1750 = vrot.slane %v1745, %v1749
      %v1752 = vadd.f32 %v1742, %v1750
      %v1753 = vadd.f32 %v1743, %v1750
      %v1754 = vadd.f32 %v1744, %v1750
      %1755 = vst.msk [vmem:[%s440] sm:$0xff] %vm447, %v1752
      %1756 = vst.msk [vmem:[%s440 + $0x8] sm:$0xff] %vm447, %v1753
      %1757 = vst.msk [vmem:[%s440 + $0x10] sm:$0x1] %vm454, %v1754
      %p1758 = scmp.lt.s32.totalorder %s24, 1
      %s1759 = scalar_select %p1758, %s24, 1
      %s1760 = smul.addr %s1759, 3
      %s1761 = smul.addr %s1760, 8
      %s1762 = scalar_lea.vmem %s13, %s1761
      // Predicated region
      $region73: #{modified_vit_forward.5} parent=71 // pred_check
        %p1763 = pneg %p320
      $region74: #{modified_vit_forward.5} parent=71 // pred_check_branch
        %1765 = sbr.rel (%p1763) target = $region76
      $region75: #{modified_vit_forward.5} parent=71 // pred_region
        _
      $region76: #{modified_vit_forward.5} parent=71 // pred_fallthru
        _
    $region72: #{modified_vit_forward.5} parent=5 // pred_fallthru
      _
    %p1766 = scmp.le.s32.totalorder 2, %s19
    // Predicated region
    $region77: #{modified_vit_forward.5} parent=5 // pred_check
      %p1767 = pneg %p1766
    $region78: #{modified_vit_forward.5} parent=5 // pred_check_branch
      %1769 = sbr.rel (%p1767) target = $region80
    $region79: #{modified_vit_forward.5} parent=5 // pred_region
      %s1770 = ssub.s32 %s19, 2
      // Predicated region
      $region81: #{modified_vit_forward.5} parent=79 // pred_check
        %p1771 = pneg %p326
      $region82: #{modified_vit_forward.5} parent=79 // pred_check_branch
        %1773 = sbr.rel (%p1771) target = $region84
      $region83: #{modified_vit_forward.5} parent=79 // pred_region
        %p1774 = scmp.lt.s32.totalorder %s25, 1
        %s1775 = scalar_select %p1774, %s25, 1
        %s1776 = smul.addr %s1775, 3
        %s1777 = smul.addr %s1776, 8
        %s1778 = scalar_lea.vmem %s13, %s1777
      $region84: #{modified_vit_forward.5} parent=79 // pred_fallthru
        _
    $region80: #{modified_vit_forward.5} parent=5 // pred_fallthru
      _
  $region6: #{modified_vit_forward.5} parent=0 // loop_footer
    %s23 = sadd.s32 1, %s19
  $region7: #{modified_vit_forward.5} parent=0 // loop_footer_branch
    %18 = sbr.rel target = $region3
  $region8: #{modified_vit_forward.5} parent=0 // loop_exit
    _

</llo_original>
